<compile_context>
chip_gen: v5e
topology: v5e:2x2
jax: 0.10.0
libtpu: 0.0.40
codegen_flags: <defaults>
</compile_context>

<pallas_src>
import functools

import jax
import jax.numpy as jnp
from jax.experimental import pallas as pl
from jax.experimental.pallas import tpu as pltpu


_BYTES_F32 = 4
_MIB = 1024 * 1024


def _vmem_budgets():
    """(fused-slab budget, vmem_limit_bytes, is_low_vmem_part)."""
    cap = None
    try:
        info = pltpu.get_tpu_info()
        cap = getattr(info, "vmem_capacity_bytes", None)
    except Exception:
        cap = None
    if cap is None:
        cap = 64 * _MIB          # conservative: assume the smaller (v7x) part
    if cap >= 100 * _MIB:        # v5e / v6e: 128 MiB physical VMEM
        return 64 * _MIB, 100 * _MIB, False
    # v7x: 64 MiB per TensorCore -- cap well below the 128-MiB-part budgets.
    return 28 * _MIB, 48 * _MIB, True


# ---------------------------------------------------------------------------
# Fully fused kernel (grid over batch only): pooled means + global MLPs +
# local MLPs + sigmoid gate + blend; x and r read from HBM exactly once.
# Blocks are (1, C, HW): HW (lanes) and C (sublanes) are full dims.
# ---------------------------------------------------------------------------
def _fused_kernel(x_ref, r_ref,
                  lw1x, lb1x, lw1r, lb1r, lw2x, lw2r, lb2,
                  gw1x, gb1x, gw1r, gb1r, gw2x, gw2r, gb2,
                  o_ref, *, hw):
    x = x_ref[0]                                          # (C, HW) f32
    r = r_ref[0]
    xb = x.astype(jnp.bfloat16)
    rb = r.astype(jnp.bfloat16)

    # --- global branch: adaptive avg pool (lane reduction) + tiny MLPs ---
    inv = jnp.float32(1.0 / hw)
    mx = (jnp.sum(x, axis=1, keepdims=True) * inv).astype(jnp.bfloat16)   # (C,1)
    mr = (jnp.sum(r, axis=1, keepdims=True) * inv).astype(jnp.bfloat16)
    hgx = jnp.maximum(
        jnp.dot(gw1x[...], mx, preferred_element_type=jnp.float32) + gb1x[...],
        0.0)                                              # (Ci, 1)
    hgr = jnp.maximum(
        jnp.dot(gw1r[...], mr, preferred_element_type=jnp.float32) + gb1r[...],
        0.0)
    g = (jnp.dot(gw2x[...], hgx.astype(jnp.bfloat16),
                 preferred_element_type=jnp.float32)
         + jnp.dot(gw2r[...], hgr.astype(jnp.bfloat16),
                   preferred_element_type=jnp.float32)
         + gb2[...])                                      # (C, 1)

    # --- local branches (second layer as two dots; 0.5 pre-folded) ---
    hx = jnp.maximum(
        jnp.dot(lw1x[...], xb, preferred_element_type=jnp.float32) + lb1x[...],
        0.0)                                              # (Ci, HW)
    hr = jnp.maximum(
        jnp.dot(lw1r[...], rb, preferred_element_type=jnp.float32) + lb1r[...],
        0.0)
    xlg = (jnp.dot(lw2x[...], hx.astype(jnp.bfloat16),
                   preferred_element_type=jnp.float32)
           + jnp.dot(lw2r[...], hr.astype(jnp.bfloat16),
                     preferred_element_type=jnp.float32)
           + lb2[...] + g)                                # (C, HW)

    xi = 0.5 * (jnp.tanh(0.5 * xlg) + 1.0)                # == sigmoid, 1 EUP op
    o_ref[0] = (r + (x - r) * xi).astype(o_ref.dtype)


# ---------------------------------------------------------------------------
# Two-pass fallback (large H*W): pass 1 reduces the spatial mean and runs the
# global MLPs; pass 2 streams spatial tiles for the local MLPs + gate + blend.
# ---------------------------------------------------------------------------
def _global_kernel(x_ref, r_ref,
                   gw1x, gb1x, gw1r, gb1r, gw2x, gw2r, gb2,
                   g_ref, sum_x, sum_r, *, hw):
    t = pl.program_id(1)

    @pl.when(t == 0)
    def _():
        sum_x[...] = jnp.zeros_like(sum_x)
        sum_r[...] = jnp.zeros_like(sum_r)

    sum_x[...] += jnp.sum(x_ref[0], axis=1, keepdims=True)   # (C, 1)
    sum_r[...] += jnp.sum(r_ref[0], axis=1, keepdims=True)

    @pl.when(t == pl.num_programs(1) - 1)
    def _():
        inv = jnp.float32(1.0 / hw)        # true HW: zero-padded lanes add 0
        mx = (sum_x[...] * inv).astype(jnp.bfloat16)
        mr = (sum_r[...] * inv).astype(jnp.bfloat16)
        hgx = jnp.maximum(
            jnp.dot(gw1x[...], mx, preferred_element_type=jnp.float32)
            + gb1x[...], 0.0)
        hgr = jnp.maximum(
            jnp.dot(gw1r[...], mr, preferred_element_type=jnp.float32)
            + gb1r[...], 0.0)
        g_ref[0] = (jnp.dot(gw2x[...], hgx.astype(jnp.bfloat16),
                            preferred_element_type=jnp.float32)
                    + jnp.dot(gw2r[...], hgr.astype(jnp.bfloat16),
                              preferred_element_type=jnp.float32)
                    + gb2[...])


def _fuse_kernel(g_ref, x_ref, r_ref,
                 lw1x, lb1x, lw1r, lb1r, lw2x, lw2r, lb2,
                 o_ref):
    x = x_ref[0]                                          # (C, TS)
    r = r_ref[0]
    xb = x.astype(jnp.bfloat16)
    rb = r.astype(jnp.bfloat16)
    hx = jnp.maximum(
        jnp.dot(lw1x[...], xb, preferred_element_type=jnp.float32) + lb1x[...],
        0.0)
    hr = jnp.maximum(
        jnp.dot(lw1r[...], rb, preferred_element_type=jnp.float32) + lb1r[...],
        0.0)
    xlg = (jnp.dot(lw2x[...], hx.astype(jnp.bfloat16),
                   preferred_element_type=jnp.float32)
           + jnp.dot(lw2r[...], hr.astype(jnp.bfloat16),
                     preferred_element_type=jnp.float32)
           + lb2[...] + g_ref[0])
    xi = 0.5 * (jnp.tanh(0.5 * xlg) + 1.0)
    o_ref[0] = (r + (x - r) * xi).astype(o_ref.dtype)


# ---------------------------------------------------------------------------
# Wrapper
# ---------------------------------------------------------------------------
def _pick_tile(hw, c, budget_bytes):
    """Largest multiple-of-128 lane tile (<=2048) keeping ~10 f32 slabs in VMEM."""
    cap = budget_bytes // (10 * c * _BYTES_F32)
    cap = max(128, (cap // 128) * 128)
    hw_pad = -(-hw // 128) * 128
    return int(min(cap, hw_pad, 2048))


def iaff_forward(x_nchw, res_nchw, params):
    """x, residual: (B, C, H, W) float32. Returns (B, C, H, W)."""
    B, C, H, W = x_nchw.shape
    HW = H * W

    # NCHW kept as-is; only a free reshape to put spatial on the lane axis.
    x = x_nchw.reshape(B, C, HW)
    r = res_nchw.reshape(B, C, HW)

    packed = pack_params(params)
    local_w = packed[:7]
    global_w = packed[7:]

    slab_budget, vmem_limit, low_vmem = _vmem_budgets()

    def wspecs(weights, n_grid_axes):
        if n_grid_axes == 1:
            return [pl.BlockSpec(w.shape, lambda b: (0, 0)) for w in weights]
        return [pl.BlockSpec(w.shape, lambda b, t: (0, 0)) for w in weights]

    cparams = pltpu.CompilerParams

    # -------- fused single-pass path: whole (C, HW) slab per batch --------
    # ~10 f32 slabs covers x/r/out double-buffering + bf16 copies + hx/hr/xlg.
    fused_bytes = 10 * C * HW * _BYTES_F32
    # Dual-TC parts (v7x): B == 1 on a batch-only grid leaves a core idle;
    # prefer the spatially tiled path (both cores stream HBM) for large HW.
    prefer_tiled = low_vmem and B == 1 and HW >= 4096

    if fused_bytes <= slab_budget and not prefer_tiled:
        slab_spec = pl.BlockSpec((1, C, HW), lambda b: (b, 0, 0))
        out = pl.pallas_call(
            functools.partial(_fused_kernel, hw=HW),
            out_shape=jax.ShapeDtypeStruct((B, C, HW), jnp.float32),
            grid=(B,),
            in_specs=[slab_spec, slab_spec]
                     + wspecs(local_w, 1) + wspecs(global_w, 1),
            out_specs=slab_spec,
            compiler_params=cparams(
                dimension_semantics=("parallel",),
                vmem_limit_bytes=vmem_limit),
        )(x, r, *local_w, *global_w)
        return out.reshape(B, C, H, W)

    # -------- two-pass fallback for large spatial extents --------
    TS = _pick_tile(HW, C, slab_budget)
    nT = pl.cdiv(HW, TS)
    HWp = nT * TS
    if HWp != HW:
        # Zero-pad the spatial tail: zeros are inert for the sum (mean divides
        # by the true HW) and the padded output lanes are sliced off below.
        x = jnp.pad(x, ((0, 0), (0, 0), (0, HWp - HW)))
        r = jnp.pad(r, ((0, 0), (0, 0), (0, HWp - HW)))

    if low_vmem and TS <= 512:
        # Small tiles (tight v7x VMEM): deepen pipelining to hide DMA.
        tile_in = pl.BlockSpec((1, C, TS), lambda b, t: (b, 0, t),
                               pipeline_mode=pl.Buffered(3))
    else:
        tile_in = pl.BlockSpec((1, C, TS), lambda b, t: (b, 0, t))
    tile_out = pl.BlockSpec((1, C, TS), lambda b, t: (b, 0, t))
    gvec_spec = pl.BlockSpec((1, C, 1), lambda b, t: (b, 0, 0))

    g = pl.pallas_call(
        functools.partial(_global_kernel, hw=HW),
        out_shape=jax.ShapeDtypeStruct((B, C, 1), jnp.float32),
        grid=(B, nT),
        in_specs=[tile_in, tile_in] + wspecs(global_w, 2),
        out_specs=gvec_spec,
        scratch_shapes=[pltpu.VMEM((C, 1), jnp.float32),
                        pltpu.VMEM((C, 1), jnp.float32)],
        compiler_params=cparams(
            dimension_semantics=("parallel", "arbitrary"),
            vmem_limit_bytes=vmem_limit),
    )(x, r, *global_w)

    out = pl.pallas_call(
        _fuse_kernel,
        out_shape=jax.ShapeDtypeStruct((B, C, HWp), jnp.float32),
        grid=(B, nT),
        in_specs=[gvec_spec, tile_in, tile_in] + wspecs(local_w, 2),
        out_specs=tile_out,
        compiler_params=cparams(
            dimension_semantics=("parallel", "parallel"),
            vmem_limit_bytes=vmem_limit),
    )(g, x, r, *local_w)

    if HWp != HW:
        out = out[:, :, :HW]
    return out.reshape(B, C, H, W)


# ---------------------------------------------------------------------------
# Parameters: conv1x1 + BN folded (eval mode), raw (unpacked) layout:
#   W1 (Ci, C), b1 (Ci,), W2 (C, Ci), b2 (C,)  so that  y = W @ x  for
#   channel-major activations x of shape (C, spatial).
# ---------------------------------------------------------------------------
def _fold_conv_bn(key, c_in, c_out, eps=1e-5):
    ks = jax.random.split(key, 6)
    Wm = jax.random.normal(ks[0], (c_out, c_in), jnp.float32) * 0.1
    b = jax.random.normal(ks[1], (c_out,), jnp.float32) * 0.1
    gamma = jax.random.uniform(ks[2], (c_out,), jnp.float32, minval=0.5, maxval=1.5)
    beta = jax.random.normal(ks[3], (c_out,), jnp.float32) * 0.1
    mean = jax.random.normal(ks[4], (c_out,), jnp.float32) * 0.1
    var = jax.random.uniform(ks[5], (c_out,), jnp.float32, minval=0.5, maxval=1.5)
    scale = gamma / jnp.sqrt(var + eps)
    Wf = Wm * scale[:, None]
    bf = (b - mean) * scale + beta
    return Wf, bf


def _make_branch(key, C, Ci):
    k1, k2 = jax.random.split(key)
    W1, b1 = _fold_conv_bn(k1, C, Ci)
    W2, b2 = _fold_conv_bn(k2, Ci, C)
    return (W1, b1, W2, b2)


def make_params(key, channels=64, r=4):
    Ci = channels // r
    keys = jax.random.split(key, 4)
    return {
        "local_x": _make_branch(keys[0], channels, Ci),
        "local_r": _make_branch(keys[1], channels, Ci),
        "global_x": _make_branch(keys[2], channels, Ci),
        "global_r": _make_branch(keys[3], channels, Ci),
    }


def pack_params(params):
    """Pack raw branch params for the kernels: weights cast to bf16 (single-pass
    MXU issue), biases as f32 column vectors, second-layer weights kept split
    per branch with the 0.5 factor folded into the residual branch."""
    bf16 = jnp.bfloat16

    def pack_pair(pa, pb):
        W1a, b1a, W2a, b2a = pa
        W1b, b1b, W2b, b2b = pb
        return (W1a.astype(bf16), b1a[:, None],
                W1b.astype(bf16), b1b[:, None],
                W2a.astype(bf16), (0.5 * W2b).astype(bf16),
                (b2a + 0.5 * b2b)[:, None])

    return (pack_pair(params["local_x"], params["local_r"])
            + pack_pair(params["global_x"], params["global_r"]))


# ---------------------------------------------------------------------------
# Pure-JAX reference (correctness check), built from the raw f32 params.
# ---------------------------------------------------------------------------
def _branch_mlp(v, p):
    # v: (B, C, S)
    W1, b1, W2, b2 = p
    h = jnp.maximum(jnp.einsum("ic,bcs->bis", W1, v) + b1[None, :, None], 0.0)
    return jnp.einsum("ci,bis->bcs", W2, h) + b2[None, :, None]


def iaff_reference(x_nchw, res_nchw, params):
    B, C, H, W = x_nchw.shape
    x = x_nchw.reshape(B, C, H * W)
    r = res_nchw.reshape(B, C, H * W)
    xl = _branch_mlp(x, params["local_x"])
    xl2 = _branch_mlp(r, params["local_r"])
    gx = _branch_mlp(jnp.mean(x, axis=2, keepdims=True), params["global_x"])
    gr = _branch_mlp(jnp.mean(r, axis=2, keepdims=True), params["global_r"])
    xlg = xl + 0.5 * xl2 + gx + 0.5 * gr
    xi = jax.nn.sigmoid(xlg)
    out = x * xi + r * (1.0 - xi)
    return out.reshape(B, C, H, W)


if __name__ == "__main__":
    key = jax.random.PRNGKey(0)
    k_x, k_r, k_p = jax.random.split(key, 3)

    B, C, H, W = 2, 64, 16, 16   # channels=64, r=4 as in the module defaults
    x = jax.random.normal(k_x, (B, C, H, W), jnp.float32)
    residual = jax.random.normal(k_r, (B, C, H, W), jnp.float32)
    params = make_params(k_p, channels=C, r=4)

    out = iaff_forward(x, residual, params)
    out = jax.block_until_ready(out)

    ref = iaff_reference(x, residual, params)
    assert out.shape == (B, C, H, W)
    # Tolerance deliberately loosened: kernel matmuls run in bf16 on the MXU
    # (f32 accumulate) vs. the f32 JAX reference.
    assert jnp.allclose(out, ref, atol=5e-2, rtol=5e-2), "mismatch vs reference"

    print("KERNEL_OK")
</pallas_src>

<mosaic_0001>
module attributes {stable_mosaic.version = 11 : i64} {
  func.func @_fused_kernel(%arg0: i32, %arg1: memref<1x64x256xf32, #tpu.memory_space<vmem>>, %arg2: memref<1x64x256xf32, #tpu.memory_space<vmem>>, %arg3: memref<16x64xbf16, #tpu.memory_space<vmem>>, %arg4: memref<16x1xf32, #tpu.memory_space<vmem>>, %arg5: memref<16x64xbf16, #tpu.memory_space<vmem>>, %arg6: memref<16x1xf32, #tpu.memory_space<vmem>>, %arg7: memref<64x16xbf16, #tpu.memory_space<vmem>>, %arg8: memref<64x16xbf16, #tpu.memory_space<vmem>>, %arg9: memref<64x1xf32, #tpu.memory_space<vmem>>, %arg10: memref<16x64xbf16, #tpu.memory_space<vmem>>, %arg11: memref<16x1xf32, #tpu.memory_space<vmem>>, %arg12: memref<16x64xbf16, #tpu.memory_space<vmem>>, %arg13: memref<16x1xf32, #tpu.memory_space<vmem>>, %arg14: memref<64x16xbf16, #tpu.memory_space<vmem>>, %arg15: memref<64x16xbf16, #tpu.memory_space<vmem>>, %arg16: memref<64x1xf32, #tpu.memory_space<vmem>>, %arg17: memref<1x64x256xf32, #tpu.memory_space<vmem>>) attributes {dimension_semantics = [#tpu.dimension_semantics<parallel>], iteration_bounds = array<i64: 2>, scalar_prefetch = 0 : i64, scratch_operands = 0 : i64, tpu.core_type = #tpu.core_type<tc>, window_params = [{transform_indices = @transform_0, window_bounds = array<i64: 1, 64, 256>}, {transform_indices = @transform_1, window_bounds = array<i64: 1, 64, 256>}, {pipeline_mode = #tpu.pipeline_mode<synchronous>, transform_indices = @transform_2, window_bounds = array<i64: 16, 64>}, {pipeline_mode = #tpu.pipeline_mode<synchronous>, transform_indices = @transform_3, window_bounds = array<i64: 16, 1>}, {pipeline_mode = #tpu.pipeline_mode<synchronous>, transform_indices = @transform_4, window_bounds = array<i64: 16, 64>}, {pipeline_mode = #tpu.pipeline_mode<synchronous>, transform_indices = @transform_5, window_bounds = array<i64: 16, 1>}, {pipeline_mode = #tpu.pipeline_mode<synchronous>, transform_indices = @transform_6, window_bounds = array<i64: 64, 16>}, {pipeline_mode = #tpu.pipeline_mode<synchronous>, transform_indices = @transform_7, window_bounds = array<i64: 64, 16>}, {pipeline_mode = #tpu.pipeline_mode<synchronous>, transform_indices = @transform_8, window_bounds = array<i64: 64, 1>}, {pipeline_mode = #tpu.pipeline_mode<synchronous>, transform_indices = @transform_9, window_bounds = array<i64: 16, 64>}, {pipeline_mode = #tpu.pipeline_mode<synchronous>, transform_indices = @transform_10, window_bounds = array<i64: 16, 1>}, {pipeline_mode = #tpu.pipeline_mode<synchronous>, transform_indices = @transform_11, window_bounds = array<i64: 16, 64>}, {pipeline_mode = #tpu.pipeline_mode<synchronous>, transform_indices = @transform_12, window_bounds = array<i64: 16, 1>}, {pipeline_mode = #tpu.pipeline_mode<synchronous>, transform_indices = @transform_13, window_bounds = array<i64: 64, 16>}, {pipeline_mode = #tpu.pipeline_mode<synchronous>, transform_indices = @transform_14, window_bounds = array<i64: 64, 16>}, {pipeline_mode = #tpu.pipeline_mode<synchronous>, transform_indices = @transform_15, window_bounds = array<i64: 64, 1>}, {transform_indices = @transform_16, window_bounds = array<i64: 1, 64, 256>}]} {
    %c0 = arith.constant 0 : index
    %c0_0 = arith.constant 0 : index
    %c0_1 = arith.constant 0 : index
    %0 = vector.load %arg1[%c0, %c0_0, %c0_1] : memref<1x64x256xf32, #tpu.memory_space<vmem>>, vector<1x64x256xf32>
    %1 = vector.shape_cast %0 : vector<1x64x256xf32> to vector<64x256xf32>
    %c0_2 = arith.constant 0 : index
    %c0_3 = arith.constant 0 : index
    %c0_4 = arith.constant 0 : index
    %2 = vector.load %arg2[%c0_2, %c0_3, %c0_4] : memref<1x64x256xf32, #tpu.memory_space<vmem>>, vector<1x64x256xf32>
    %3 = vector.shape_cast %2 : vector<1x64x256xf32> to vector<64x256xf32>
    %4 = arith.truncf %1 : vector<64x256xf32> to vector<64x256xbf16>
    %5 = arith.truncf %3 : vector<64x256xf32> to vector<64x256xbf16>
    %cst = arith.constant dense<0.000000e+00> : vector<64xf32>
    %6 = vector.multi_reduction <add>, %1, %cst [1] : vector<64x256xf32> to vector<64xf32>
    %7 = vector.shape_cast %6 : vector<64xf32> to vector<64x1xf32>
    %cst_5 = arith.constant 3.906250e-03 : f32
    %8 = vector.broadcast %cst_5 : f32 to vector<64x1xf32>
    %9 = arith.mulf %7, %8 : vector<64x1xf32>
    %10 = arith.truncf %9 : vector<64x1xf32> to vector<64x1xbf16>
    %cst_6 = arith.constant dense<0.000000e+00> : vector<64xf32>
    %11 = vector.multi_reduction <add>, %3, %cst_6 [1] : vector<64x256xf32> to vector<64xf32>
    %12 = vector.shape_cast %11 : vector<64xf32> to vector<64x1xf32>
    %cst_7 = arith.constant 3.906250e-03 : f32
    %13 = vector.broadcast %cst_7 : f32 to vector<64x1xf32>
    %14 = arith.mulf %12, %13 : vector<64x1xf32>
    %15 = arith.truncf %14 : vector<64x1xf32> to vector<64x1xbf16>
    %c0_8 = arith.constant 0 : index
    %c0_9 = arith.constant 0 : index
    %16 = vector.load %arg10[%c0_8, %c0_9] : memref<16x64xbf16, #tpu.memory_space<vmem>>, vector<16x64xbf16>
    %cst_10 = arith.constant dense<0.000000e+00> : vector<16x1xf32>
    %17 = tpu.matmul %16, %10, %cst_10 {dimension_numbers = #tpu.dot_dimension_numbers<[1], [0], [0], [1], [0, 0, 1, 1], [], []>} : vector<16x64xbf16>, vector<64x1xbf16>, vector<16x1xf32> -> vector<16x1xf32>
    %c0_11 = arith.constant 0 : index
    %c0_12 = arith.constant 0 : index
    %18 = vector.load %arg11[%c0_11, %c0_12] : memref<16x1xf32, #tpu.memory_space<vmem>>, vector<16x1xf32>
    %19 = arith.addf %17, %18 : vector<16x1xf32>
    %cst_13 = arith.constant 0.000000e+00 : f32
    %20 = vector.broadcast %cst_13 : f32 to vector<16x1xf32>
    %21 = arith.maximumf %19, %20 : vector<16x1xf32>
    %c0_14 = arith.constant 0 : index
    %c0_15 = arith.constant 0 : index
    %22 = vector.load %arg12[%c0_14, %c0_15] : memref<16x64xbf16, #tpu.memory_space<vmem>>, vector<16x64xbf16>
    %cst_16 = arith.constant dense<0.000000e+00> : vector<16x1xf32>
    %23 = tpu.matmul %22, %15, %cst_16 {dimension_numbers = #tpu.dot_dimension_numbers<[1], [0], [0], [1], [0, 0, 1, 1], [], []>} : vector<16x64xbf16>, vector<64x1xbf16>, vector<16x1xf32> -> vector<16x1xf32>
    %c0_17 = arith.constant 0 : index
    %c0_18 = arith.constant 0 : index
    %24 = vector.load %arg13[%c0_17, %c0_18] : memref<16x1xf32, #tpu.memory_space<vmem>>, vector<16x1xf32>
    %25 = arith.addf %23, %24 : vector<16x1xf32>
    %cst_19 = arith.constant 0.000000e+00 : f32
    %26 = vector.broadcast %cst_19 : f32 to vector<16x1xf32>
    %27 = arith.maximumf %25, %26 : vector<16x1xf32>
    %c0_20 = arith.constant 0 : index
    %c0_21 = arith.constant 0 : index
    %28 = vector.load %arg14[%c0_20, %c0_21] : memref<64x16xbf16, #tpu.memory_space<vmem>>, vector<64x16xbf16>
    %29 = arith.truncf %21 : vector<16x1xf32> to vector<16x1xbf16>
    %cst_22 = arith.constant dense<0.000000e+00> : vector<64x1xf32>
    %30 = tpu.matmul %28, %29, %cst_22 {dimension_numbers = #tpu.dot_dimension_numbers<[1], [0], [0], [1], [0, 0, 1, 1], [], []>} : vector<64x16xbf16>, vector<16x1xbf16>, vector<64x1xf32> -> vector<64x1xf32>
    %c0_23 = arith.constant 0 : index
    %c0_24 = arith.constant 0 : index
    %31 = vector.load %arg15[%c0_23, %c0_24] : memref<64x16xbf16, #tpu.memory_space<vmem>>, vector<64x16xbf16>
    %32 = arith.truncf %27 : vector<16x1xf32> to vector<16x1xbf16>
    %cst_25 = arith.constant dense<0.000000e+00> : vector<64x1xf32>
    %33 = tpu.matmul %31, %32, %cst_25 {dimension_numbers = #tpu.dot_dimension_numbers<[1], [0], [0], [1], [0, 0, 1, 1], [], []>} : vector<64x16xbf16>, vector<16x1xbf16>, vector<64x1xf32> -> vector<64x1xf32>
    %34 = arith.addf %30, %33 : vector<64x1xf32>
    %c0_26 = arith.constant 0 : index
    %c0_27 = arith.constant 0 : index
    %35 = vector.load %arg16[%c0_26, %c0_27] : memref<64x1xf32, #tpu.memory_space<vmem>>, vector<64x1xf32>
    %36 = arith.addf %34, %35 : vector<64x1xf32>
    %c0_28 = arith.constant 0 : index
    %c0_29 = arith.constant 0 : index
    %37 = vector.load %arg3[%c0_28, %c0_29] : memref<16x64xbf16, #tpu.memory_space<vmem>>, vector<16x64xbf16>
    %cst_30 = arith.constant dense<0.000000e+00> : vector<16x256xf32>
    %38 = tpu.matmul %37, %4, %cst_30 {dimension_numbers = #tpu.dot_dimension_numbers<[1], [0], [0], [1], [0, 0, 1, 1], [], []>} : vector<16x64xbf16>, vector<64x256xbf16>, vector<16x256xf32> -> vector<16x256xf32>
    %c0_31 = arith.constant 0 : index
    %c0_32 = arith.constant 0 : index
    %39 = vector.load %arg4[%c0_31, %c0_32] : memref<16x1xf32, #tpu.memory_space<vmem>>, vector<16x1xf32>
    %40 = vector.broadcast %39 : vector<16x1xf32> to vector<16x256xf32>
    %41 = arith.addf %38, %40 : vector<16x256xf32>
    %cst_33 = arith.constant 0.000000e+00 : f32
    %42 = vector.broadcast %cst_33 : f32 to vector<16x256xf32>
    %43 = arith.maximumf %41, %42 : vector<16x256xf32>
    %c0_34 = arith.constant 0 : index
    %c0_35 = arith.constant 0 : index
    %44 = vector.load %arg5[%c0_34, %c0_35] : memref<16x64xbf16, #tpu.memory_space<vmem>>, vector<16x64xbf16>
    %cst_36 = arith.constant dense<0.000000e+00> : vector<16x256xf32>
    %45 = tpu.matmul %44, %5, %cst_36 {dimension_numbers = #tpu.dot_dimension_numbers<[1], [0], [0], [1], [0, 0, 1, 1], [], []>} : vector<16x64xbf16>, vector<64x256xbf16>, vector<16x256xf32> -> vector<16x256xf32>
    %c0_37 = arith.constant 0 : index
    %c0_38 = arith.constant 0 : index
    %46 = vector.load %arg6[%c0_37, %c0_38] : memref<16x1xf32, #tpu.memory_space<vmem>>, vector<16x1xf32>
    %47 = vector.broadcast %46 : vector<16x1xf32> to vector<16x256xf32>
    %48 = arith.addf %45, %47 : vector<16x256xf32>
    %cst_39 = arith.constant 0.000000e+00 : f32
    %49 = vector.broadcast %cst_39 : f32 to vector<16x256xf32>
    %50 = arith.maximumf %48, %49 : vector<16x256xf32>
    %c0_40 = arith.constant 0 : index
    %c0_41 = arith.constant 0 : index
    %51 = vector.load %arg7[%c0_40, %c0_41] : memref<64x16xbf16, #tpu.memory_space<vmem>>, vector<64x16xbf16>
    %52 = arith.truncf %43 : vector<16x256xf32> to vector<16x256xbf16>
    %cst_42 = arith.constant dense<0.000000e+00> : vector<64x256xf32>
    %53 = tpu.matmul %51, %52, %cst_42 {dimension_numbers = #tpu.dot_dimension_numbers<[1], [0], [0], [1], [0, 0, 1, 1], [], []>} : vector<64x16xbf16>, vector<16x256xbf16>, vector<64x256xf32> -> vector<64x256xf32>
    %c0_43 = arith.constant 0 : index
    %c0_44 = arith.constant 0 : index
    %54 = vector.load %arg8[%c0_43, %c0_44] : memref<64x16xbf16, #tpu.memory_space<vmem>>, vector<64x16xbf16>
    %55 = arith.truncf %50 : vector<16x256xf32> to vector<16x256xbf16>
    %cst_45 = arith.constant dense<0.000000e+00> : vector<64x256xf32>
    %56 = tpu.matmul %54, %55, %cst_45 {dimension_numbers = #tpu.dot_dimension_numbers<[1], [0], [0], [1], [0, 0, 1, 1], [], []>} : vector<64x16xbf16>, vector<16x256xbf16>, vector<64x256xf32> -> vector<64x256xf32>
    %57 = arith.addf %53, %56 : vector<64x256xf32>
    %c0_46 = arith.constant 0 : index
    %c0_47 = arith.constant 0 : index
    %58 = vector.load %arg9[%c0_46, %c0_47] : memref<64x1xf32, #tpu.memory_space<vmem>>, vector<64x1xf32>
    %59 = vector.broadcast %58 : vector<64x1xf32> to vector<64x256xf32>
    %60 = arith.addf %57, %59 : vector<64x256xf32>
    %61 = vector.broadcast %36 : vector<64x1xf32> to vector<64x256xf32>
    %62 = arith.addf %60, %61 : vector<64x256xf32>
    %cst_48 = arith.constant 5.000000e-01 : f32
    %63 = vector.broadcast %cst_48 : f32 to vector<64x256xf32>
    %64 = arith.mulf %63, %62 : vector<64x256xf32>
    %65 = math.tanh %64 : vector<64x256xf32>
    %cst_49 = arith.constant 1.000000e+00 : f32
    %66 = vector.broadcast %cst_49 : f32 to vector<64x256xf32>
    %67 = arith.addf %65, %66 : vector<64x256xf32>
    %cst_50 = arith.constant 5.000000e-01 : f32
    %68 = vector.broadcast %cst_50 : f32 to vector<64x256xf32>
    %69 = arith.mulf %68, %67 : vector<64x256xf32>
    %70 = arith.subf %1, %3 : vector<64x256xf32>
    %71 = arith.mulf %70, %69 : vector<64x256xf32>
    %72 = arith.addf %3, %71 : vector<64x256xf32>
    %c0_51 = arith.constant 0 : index
    %c0_52 = arith.constant 0 : index
    %c0_53 = arith.constant 0 : index
    %73 = vector.load %arg17[%c0_51, %c0_52, %c0_53] : memref<1x64x256xf32, #tpu.memory_space<vmem>>, vector<1x64x256xf32>
    %74 = vector.shape_cast %73 : vector<1x64x256xf32> to vector<64x256xf32>
    %75 = vector.shape_cast %72 : vector<64x256xf32> to vector<1x64x256xf32>
    tpu.vector_store %arg17[%c0_51, %c0_52, %c0_53], %75 {strides = array<i32>} : memref<1x64x256xf32, #tpu.memory_space<vmem>>, vector<1x64x256xf32>,
    return
  }
  func.func @transform_0(%arg0: i32) -> (i32, i32, i32) {
    %c0_i32 = arith.constant 0 : i32
    %c0_i32_0 = arith.constant 0 : i32
    %c0_i32_1 = arith.constant 0 : i32
    return %arg0, %c0_i32, %c0_i32_0 : i32, i32, i32
  }
  func.func @transform_1(%arg0: i32) -> (i32, i32, i32) {
    %c0_i32 = arith.constant 0 : i32
    %c0_i32_0 = arith.constant 0 : i32
    %c0_i32_1 = arith.constant 0 : i32
    return %arg0, %c0_i32, %c0_i32_0 : i32, i32, i32
  }
  func.func @transform_2(%arg0: i32) -> (i32, i32) {
    %c0_i32 = arith.constant 0 : i32
    %c0_i32_0 = arith.constant 0 : i32
    %c0_i32_1 = arith.constant 0 : i32
    return %c0_i32, %c0_i32_0 : i32, i32
  }
  func.func @transform_3(%arg0: i32) -> (i32, i32) {
    %c0_i32 = arith.constant 0 : i32
    %c0_i32_0 = arith.constant 0 : i32
    %c0_i32_1 = arith.constant 0 : i32
    return %c0_i32, %c0_i32_0 : i32, i32
  }
  func.func @transform_4(%arg0: i32) -> (i32, i32) {
    %c0_i32 = arith.constant 0 : i32
    %c0_i32_0 = arith.constant 0 : i32
    %c0_i32_1 = arith.constant 0 : i32
    return %c0_i32, %c0_i32_0 : i32, i32
  }
  func.func @transform_5(%arg0: i32) -> (i32, i32) {
    %c0_i32 = arith.constant 0 : i32
    %c0_i32_0 = arith.constant 0 : i32
    %c0_i32_1 = arith.constant 0 : i32
    return %c0_i32, %c0_i32_0 : i32, i32
  }
  func.func @transform_6(%arg0: i32) -> (i32, i32) {
    %c0_i32 = arith.constant 0 : i32
    %c0_i32_0 = arith.constant 0 : i32
    %c0_i32_1 = arith.constant 0 : i32
    return %c0_i32, %c0_i32_0 : i32, i32
  }
  func.func @transform_7(%arg0: i32) -> (i32, i32) {
    %c0_i32 = arith.constant 0 : i32
    %c0_i32_0 = arith.constant 0 : i32
    %c0_i32_1 = arith.constant 0 : i32
    return %c0_i32, %c0_i32_0 : i32, i32
  }
  func.func @transform_8(%arg0: i32) -> (i32, i32) {
    %c0_i32 = arith.constant 0 : i32
    %c0_i32_0 = arith.constant 0 : i32
    %c0_i32_1 = arith.constant 0 : i32
    return %c0_i32, %c0_i32_0 : i32, i32
  }
  func.func @transform_9(%arg0: i32) -> (i32, i32) {
    %c0_i32 = arith.constant 0 : i32
    %c0_i32_0 = arith.constant 0 : i32
    %c0_i32_1 = arith.constant 0 : i32
    return %c0_i32, %c0_i32_0 : i32, i32
  }
  func.func @transform_10(%arg0: i32) -> (i32, i32) {
    %c0_i32 = arith.constant 0 : i32
    %c0_i32_0 = arith.constant 0 : i32
    %c0_i32_1 = arith.constant 0 : i32
    return %c0_i32, %c0_i32_0 : i32, i32
  }
  func.func @transform_11(%arg0: i32) -> (i32, i32) {
    %c0_i32 = arith.constant 0 : i32
    %c0_i32_0 = arith.constant 0 : i32
    %c0_i32_1 = arith.constant 0 : i32
    return %c0_i32, %c0_i32_0 : i32, i32
  }
  func.func @transform_12(%arg0: i32) -> (i32, i32) {
    %c0_i32 = arith.constant 0 : i32
    %c0_i32_0 = arith.constant 0 : i32
    %c0_i32_1 = arith.constant 0 : i32
    return %c0_i32, %c0_i32_0 : i32, i32
  }
  func.func @transform_13(%arg0: i32) -> (i32, i32) {
    %c0_i32 = arith.constant 0 : i32
    %c0_i32_0 = arith.constant 0 : i32
    %c0_i32_1 = arith.constant 0 : i32
    return %c0_i32, %c0_i32_0 : i32, i32
  }
  func.func @transform_14(%arg0: i32) -> (i32, i32) {
    %c0_i32 = arith.constant 0 : i32
    %c0_i32_0 = arith.constant 0 : i32
    %c0_i32_1 = arith.constant 0 : i32
    return %c0_i32, %c0_i32_0 : i32, i32
  }
  func.func @transform_15(%arg0: i32) -> (i32, i32) {
    %c0_i32 = arith.constant 0 : i32
    %c0_i32_0 = arith.constant 0 : i32
    %c0_i32_1 = arith.constant 0 : i32
    return %c0_i32, %c0_i32_0 : i32, i32
  }
  func.func @transform_16(%arg0: i32) -> (i32, i32, i32) {
    %c0_i32 = arith.constant 0 : i32
    %c0_i32_0 = arith.constant 0 : i32
    %c0_i32_1 = arith.constant 0 : i32
    return %arg0, %c0_i32, %c0_i32_0 : i32, i32, i32
  }
}

</mosaic_0001>

<llo_original>
// kernel: tpu_custom_call.1
$region0: #{tpu_custom_call.1}
  #allocation0 [shape = 'u32[]', space=smem, size = 0x4, offset = 0x4, fixed_abs, tag = 'smem constant byte address 0x4 - core index']
  #allocation1 [shape = 'u32[72,128]{1,0:T(1,128)}', space=vmem, size = 0x9000, scoped, tag = 'internal scratch']
  %s0 = inlined_call_operand.hbm [shape: f32[2,64,256], index: 0, kind: input, shape index: {}]
  %s1 = inlined_call_operand.hbm [shape: f32[2,64,256], index: 1, kind: input, shape index: {}]
  %s2 = inlined_call_operand.vmem [shape: bf16[16,64], index: 2, kind: input, shape index: {}]
  %s3 = inlined_call_operand.vmem [shape: f32[16,1], index: 3, kind: input, shape index: {}]
  %s4 = inlined_call_operand.vmem [shape: bf16[16,64], index: 4, kind: input, shape index: {}]
  %s5 = inlined_call_operand.vmem [shape: f32[16,1], index: 5, kind: input, shape index: {}]
  %s6 = inlined_call_operand.vmem [shape: bf16[64,16], index: 6, kind: input, shape index: {}]
  %s7 = inlined_call_operand.vmem [shape: bf16[64,16], index: 7, kind: input, shape index: {}]
  %s8 = inlined_call_operand.vmem [shape: f32[64,1], index: 8, kind: input, shape index: {}]
  %s9 = inlined_call_operand.vmem [shape: bf16[16,64], index: 9, kind: input, shape index: {}]
  %s10 = inlined_call_operand.vmem [shape: f32[16,1], index: 10, kind: input, shape index: {}]
  %s11 = inlined_call_operand.vmem [shape: bf16[16,64], index: 11, kind: input, shape index: {}]
  %s12 = inlined_call_operand.vmem [shape: f32[16,1], index: 12, kind: input, shape index: {}]
  %s13 = inlined_call_operand.vmem [shape: bf16[64,16], index: 13, kind: input, shape index: {}]
  %s14 = inlined_call_operand.vmem [shape: bf16[64,16], index: 14, kind: input, shape index: {}]
  %s15 = inlined_call_operand.vmem [shape: f32[64,1], index: 15, kind: input, shape index: {}]
  %s16 = inlined_call_operand.hbm [shape: f32[2,64,256], index: 16, kind: output, shape index: {}]
  %s17 = sld [smem:[#allocation0]]
  $region105: #{tpu_custom_call.1} parent=0
    _
  %s19 = ssub.s32 1, %s17
  %s20 = scalar_select 0, %s19, %s17
  $region1: #{tpu_custom_call.1} parent=0
    #allocation2 [shape = 'u8[131072]{0}', space=vmem, size = 0x20000, scoped, tag = 'input window, operand 0']
    #allocation3 [shape = 's32[2]{0}', space=sflag, size = 0x8, scoped, tag = 'scoped memory for tpu_custom_call.1']
    #allocation4 [shape = 's32[2]{0}', space=sflag, size = 0x8, scoped, tag = 'scoped memory for tpu_custom_call.1']
    #allocation5 [shape = 'u8[131072]{0}', space=vmem, size = 0x20000, scoped, tag = 'input window, operand 1']
    #allocation6 [shape = 's32[2]{0}', space=sflag, size = 0x8, scoped, tag = 'scoped memory for tpu_custom_call.1']
    #allocation7 [shape = 'u8[131072]{0}', space=vmem, size = 0x20000, scoped, tag = 'output window, operand 0']
    %21 = vsyncpa [#allocation3], 0
    %s22 = scalar_lea.sflag [#allocation3], 1
    %23 = vsyncpa %s22, 0
    %24 = vsyncpa [#allocation6], 0
    %s25 = scalar_lea.sflag [#allocation6], 1
    %26 = vsyncpa %s25, 0
    %27 = vsyncpa [#allocation4], 0
    %s28 = scalar_lea.sflag [#allocation4], 1
    %29 = vsyncpa %s28, 0
    loop: start=0, step=1, limit=4
    $region2: #{tpu_custom_call.1} parent=1 // loop_pre_header
      _
    $region3: #{tpu_custom_call.1} parent=1 // loop_header
      %s31 = sphi 0, %s35
      %p32 = scmp.ge.s32.totalorder %s31, 4
      %s41 = sphi 0, %s43
      %s44 = sphi 0, %s41
      %s45 = sphi 0, %s44
      %s61 = sphi 0, %s45
      %s67 = sphi 0, %s69
      %s70 = sphi 0, %s67
      %s71 = sphi 0, %s70
      %s87 = sphi 0, %s71
      %s91 = sphi 0, %s91
      %s93 = sphi 0, %s91
      %s94 = sphi 0, %s93
      %s108 = sphi 0, %s94
      %s112 = sphi 0, %s112
      %s114 = sphi 0, %s112
      %s115 = sphi 0, %s114
      %s129 = sphi 0, %s115
      %s133 = sphi 0, %s133
      %s135 = sphi 0, %s133
      %s136 = sphi 0, %s135
      %s150 = sphi 0, %s136
      %s154 = sphi 0, %s154
      %s156 = sphi 0, %s154
      %s157 = sphi 0, %s156
      %s171 = sphi 0, %s157
      %s175 = sphi 0, %s175
      %s177 = sphi 0, %s175
      %s178 = sphi 0, %s177
      %s192 = sphi 0, %s178
      %s196 = sphi 0, %s196
      %s198 = sphi 0, %s196
      %s199 = sphi 0, %s198
      %s213 = sphi 0, %s199
      %s217 = sphi 0, %s217
      %s219 = sphi 0, %s217
      %s220 = sphi 0, %s219
      %s234 = sphi 0, %s220
      %s238 = sphi 0, %s238
      %s240 = sphi 0, %s238
      %s241 = sphi 0, %s240
      %s255 = sphi 0, %s241
      %s259 = sphi 0, %s259
      %s261 = sphi 0, %s259
      %s262 = sphi 0, %s261
      %s276 = sphi 0, %s262
      %s280 = sphi 0, %s280
      %s282 = sphi 0, %s280
      %s283 = sphi 0, %s282
      %s297 = sphi 0, %s283
      %s301 = sphi 0, %s301
      %s303 = sphi 0, %s301
      %s304 = sphi 0, %s303
      %s318 = sphi 0, %s304
      %s322 = sphi 0, %s322
      %s324 = sphi 0, %s322
      %s325 = sphi 0, %s324
      %s339 = sphi 0, %s325
      %s343 = sphi 0, %s343
      %s345 = sphi 0, %s343
      %s346 = sphi 0, %s345
      %s360 = sphi 0, %s346
      %s364 = sphi 0, %s364
      %s366 = sphi 0, %s364
      %s367 = sphi 0, %s366
      %s381 = sphi 0, %s367
      %s387 = sphi 0, %s389
      %s390 = sphi 0, %s387
      %s391 = sphi 0, %s390
      %s407 = sphi 0, %s391
    $region4: #{tpu_custom_call.1} parent=1 // loop_header_branch
      %34 = sbr.rel (%p32) target = $region8
    $region5: #{tpu_custom_call.1} parent=1 // loop_body
      %s36 = ssub.s32 %s31, 1
      %s37 = ssub.s32 %s31, 2
      %s38 = sadd.s32 %s31, 1
      %s39 = ssub.s32 %s31, %s38
      %p40 = scmp.eq.s32.totalorder %s39, 0
      %s42 = sadd.s32 %s41, 1
      %s43 = scalar_select %p40, %s41, %s42
      %p46 = pneg %p40
      %p47 = scmp.eq.s32.totalorder %s31, 1
      %p48 = por %p46, %p47
      %p49 = scmp.ne.s32.totalorder %s41, %s44
      %p50 = scmp.eq.s32.totalorder %s31, 0
      %p51 = por %p49, %p50
      %p52 = scmp.ne.s32.totalorder %s41, %s44
      %p53 = scmp.eq.s32.totalorder %s36, 1
      %p54 = por %p52, %p53
      %p55 = scmp.ne.s32.totalorder %s44, %s45
      %p56 = scmp.eq.s32.totalorder %s36, 0
      %p57 = por %p55, %p56
      %p58 = scmp.ne.s32.totalorder %s44, %s45
      %p59 = scmp.eq.s32.totalorder %s37, 1
      %p60 = por %p58, %p59
      %p62 = scmp.ne.s32.totalorder %s45, %s61
      %p63 = scmp.eq.s32.totalorder %s37, 0
      %p64 = por %p62, %p63
      %s65 = ssub.s32 %s31, %s38
      %p66 = scmp.eq.s32.totalorder %s65, 0
      %s68 = sadd.s32 %s67, 1
      %s69 = scalar_select %p66, %s67, %s68
      %p72 = pneg %p66
      %p73 = scmp.eq.s32.totalorder %s31, 1
      %p74 = por %p72, %p73
      %p75 = scmp.ne.s32.totalorder %s67, %s70
      %p76 = scmp.eq.s32.totalorder %s31, 0
      %p77 = por %p75, %p76
      %p78 = scmp.ne.s32.totalorder %s67, %s70
      %p79 = scmp.eq.s32.totalorder %s36, 1
      %p80 = por %p78, %p79
      %p81 = scmp.ne.s32.totalorder %s70, %s71
      %p82 = scmp.eq.s32.totalorder %s36, 0
      %p83 = por %p81, %p82
      %p84 = scmp.ne.s32.totalorder %s70, %s71
      %p85 = scmp.eq.s32.totalorder %s37, 1
      %p86 = por %p84, %p85
      %p88 = scmp.ne.s32.totalorder %s71, %s87
      %p89 = scmp.eq.s32.totalorder %s37, 0
      %p90 = por %p88, %p89
      %s92 = sadd.s32 %s91, 1
      %p95 = scmp.eq.s32.totalorder %s31, 1
      %p96 = scmp.ne.s32.totalorder %s91, %s93
      %p97 = scmp.eq.s32.totalorder %s31, 0
      %p98 = por %p96, %p97
      %p99 = scmp.ne.s32.totalorder %s91, %s93
      %p100 = scmp.eq.s32.totalorder %s36, 1
      %p101 = por %p99, %p100
      %p102 = scmp.ne.s32.totalorder %s93, %s94
      %p103 = scmp.eq.s32.totalorder %s36, 0
      %p104 = por %p102, %p103
      %p105 = scmp.ne.s32.totalorder %s93, %s94
      %p106 = scmp.eq.s32.totalorder %s37, 1
      %p107 = por %p105, %p106
      %p109 = scmp.ne.s32.totalorder %s94, %s108
      %p110 = scmp.eq.s32.totalorder %s37, 0
      %p111 = por %p109, %p110
      %s113 = sadd.s32 %s112, 1
      %p116 = scmp.eq.s32.totalorder %s31, 1
      %p117 = scmp.ne.s32.totalorder %s112, %s114
      %p118 = scmp.eq.s32.totalorder %s31, 0
      %p119 = por %p117, %p118
      %p120 = scmp.ne.s32.totalorder %s112, %s114
      %p121 = scmp.eq.s32.totalorder %s36, 1
      %p122 = por %p120, %p121
      %p123 = scmp.ne.s32.totalorder %s114, %s115
      %p124 = scmp.eq.s32.totalorder %s36, 0
      %p125 = por %p123, %p124
      %p126 = scmp.ne.s32.totalorder %s114, %s115
      %p127 = scmp.eq.s32.totalorder %s37, 1
      %p128 = por %p126, %p127
      %p130 = scmp.ne.s32.totalorder %s115, %s129
      %p131 = scmp.eq.s32.totalorder %s37, 0
      %p132 = por %p130, %p131
      %s134 = sadd.s32 %s133, 1
      %p137 = scmp.eq.s32.totalorder %s31, 1
      %p138 = scmp.ne.s32.totalorder %s133, %s135
      %p139 = scmp.eq.s32.totalorder %s31, 0
      %p140 = por %p138, %p139
      %p141 = scmp.ne.s32.totalorder %s133, %s135
      %p142 = scmp.eq.s32.totalorder %s36, 1
      %p143 = por %p141, %p142
      %p144 = scmp.ne.s32.totalorder %s135, %s136
      %p145 = scmp.eq.s32.totalorder %s36, 0
      %p146 = por %p144, %p145
      %p147 = scmp.ne.s32.totalorder %s135, %s136
      %p148 = scmp.eq.s32.totalorder %s37, 1
      %p149 = por %p147, %p148
      %p151 = scmp.ne.s32.totalorder %s136, %s150
      %p152 = scmp.eq.s32.totalorder %s37, 0
      %p153 = por %p151, %p152
      %s155 = sadd.s32 %s154, 1
      %p158 = scmp.eq.s32.totalorder %s31, 1
      %p159 = scmp.ne.s32.totalorder %s154, %s156
      %p160 = scmp.eq.s32.totalorder %s31, 0
      %p161 = por %p159, %p160
      %p162 = scmp.ne.s32.totalorder %s154, %s156
      %p163 = scmp.eq.s32.totalorder %s36, 1
      %p164 = por %p162, %p163
      %p165 = scmp.ne.s32.totalorder %s156, %s157
      %p166 = scmp.eq.s32.totalorder %s36, 0
      %p167 = por %p165, %p166
      %p168 = scmp.ne.s32.totalorder %s156, %s157
      %p169 = scmp.eq.s32.totalorder %s37, 1
      %p170 = por %p168, %p169
      %p172 = scmp.ne.s32.totalorder %s157, %s171
      %p173 = scmp.eq.s32.totalorder %s37, 0
      %p174 = por %p172, %p173
      %s176 = sadd.s32 %s175, 1
      %p179 = scmp.eq.s32.totalorder %s31, 1
      %p180 = scmp.ne.s32.totalorder %s175, %s177
      %p181 = scmp.eq.s32.totalorder %s31, 0
      %p182 = por %p180, %p181
      %p183 = scmp.ne.s32.totalorder %s175, %s177
      %p184 = scmp.eq.s32.totalorder %s36, 1
      %p185 = por %p183, %p184
      %p186 = scmp.ne.s32.totalorder %s177, %s178
      %p187 = scmp.eq.s32.totalorder %s36, 0
      %p188 = por %p186, %p187
      %p189 = scmp.ne.s32.totalorder %s177, %s178
      %p190 = scmp.eq.s32.totalorder %s37, 1
      %p191 = por %p189, %p190
      %p193 = scmp.ne.s32.totalorder %s178, %s192
      %p194 = scmp.eq.s32.totalorder %s37, 0
      %p195 = por %p193, %p194
      %s197 = sadd.s32 %s196, 1
      %p200 = scmp.eq.s32.totalorder %s31, 1
      %p201 = scmp.ne.s32.totalorder %s196, %s198
      %p202 = scmp.eq.s32.totalorder %s31, 0
      %p203 = por %p201, %p202
      %p204 = scmp.ne.s32.totalorder %s196, %s198
      %p205 = scmp.eq.s32.totalorder %s36, 1
      %p206 = por %p204, %p205
      %p207 = scmp.ne.s32.totalorder %s198, %s199
      %p208 = scmp.eq.s32.totalorder %s36, 0
      %p209 = por %p207, %p208
      %p210 = scmp.ne.s32.totalorder %s198, %s199
      %p211 = scmp.eq.s32.totalorder %s37, 1
      %p212 = por %p210, %p211
      %p214 = scmp.ne.s32.totalorder %s199, %s213
      %p215 = scmp.eq.s32.totalorder %s37, 0
      %p216 = por %p214, %p215
      %s218 = sadd.s32 %s217, 1
      %p221 = scmp.eq.s32.totalorder %s31, 1
      %p222 = scmp.ne.s32.totalorder %s217, %s219
      %p223 = scmp.eq.s32.totalorder %s31, 0
      %p224 = por %p222, %p223
      %p225 = scmp.ne.s32.totalorder %s217, %s219
      %p226 = scmp.eq.s32.totalorder %s36, 1
      %p227 = por %p225, %p226
      %p228 = scmp.ne.s32.totalorder %s219, %s220
      %p229 = scmp.eq.s32.totalorder %s36, 0
      %p230 = por %p228, %p229
      %p231 = scmp.ne.s32.totalorder %s219, %s220
      %p232 = scmp.eq.s32.totalorder %s37, 1
      %p233 = por %p231, %p232
      %p235 = scmp.ne.s32.totalorder %s220, %s234
      %p236 = scmp.eq.s32.totalorder %s37, 0
      %p237 = por %p235, %p236
      %s239 = sadd.s32 %s238, 1
      %p242 = scmp.eq.s32.totalorder %s31, 1
      %p243 = scmp.ne.s32.totalorder %s238, %s240
      %p244 = scmp.eq.s32.totalorder %s31, 0
      %p245 = por %p243, %p244
      %p246 = scmp.ne.s32.totalorder %s238, %s240
      %p247 = scmp.eq.s32.totalorder %s36, 1
      %p248 = por %p246, %p247
      %p249 = scmp.ne.s32.totalorder %s240, %s241
      %p250 = scmp.eq.s32.totalorder %s36, 0
      %p251 = por %p249, %p250
      %p252 = scmp.ne.s32.totalorder %s240, %s241
      %p253 = scmp.eq.s32.totalorder %s37, 1
      %p254 = por %p252, %p253
      %p256 = scmp.ne.s32.totalorder %s241, %s255
      %p257 = scmp.eq.s32.totalorder %s37, 0
      %p258 = por %p256, %p257
      %s260 = sadd.s32 %s259, 1
      %p263 = scmp.eq.s32.totalorder %s31, 1
      %p264 = scmp.ne.s32.totalorder %s259, %s261
      %p265 = scmp.eq.s32.totalorder %s31, 0
      %p266 = por %p264, %p265
      %p267 = scmp.ne.s32.totalorder %s259, %s261
      %p268 = scmp.eq.s32.totalorder %s36, 1
      %p269 = por %p267, %p268
      %p270 = scmp.ne.s32.totalorder %s261, %s262
      %p271 = scmp.eq.s32.totalorder %s36, 0
      %p272 = por %p270, %p271
      %p273 = scmp.ne.s32.totalorder %s261, %s262
      %p274 = scmp.eq.s32.totalorder %s37, 1
      %p275 = por %p273, %p274
      %p277 = scmp.ne.s32.totalorder %s262, %s276
      %p278 = scmp.eq.s32.totalorder %s37, 0
      %p279 = por %p277, %p278
      %s281 = sadd.s32 %s280, 1
      %p284 = scmp.eq.s32.totalorder %s31, 1
      %p285 = scmp.ne.s32.totalorder %s280, %s282
      %p286 = scmp.eq.s32.totalorder %s31, 0
      %p287 = por %p285, %p286
      %p288 = scmp.ne.s32.totalorder %s280, %s282
      %p289 = scmp.eq.s32.totalorder %s36, 1
      %p290 = por %p288, %p289
      %p291 = scmp.ne.s32.totalorder %s282, %s283
      %p292 = scmp.eq.s32.totalorder %s36, 0
      %p293 = por %p291, %p292
      %p294 = scmp.ne.s32.totalorder %s282, %s283
      %p295 = scmp.eq.s32.totalorder %s37, 1
      %p296 = por %p294, %p295
      %p298 = scmp.ne.s32.totalorder %s283, %s297
      %p299 = scmp.eq.s32.totalorder %s37, 0
      %p300 = por %p298, %p299
      %s302 = sadd.s32 %s301, 1
      %p305 = scmp.eq.s32.totalorder %s31, 1
      %p306 = scmp.ne.s32.totalorder %s301, %s303
      %p307 = scmp.eq.s32.totalorder %s31, 0
      %p308 = por %p306, %p307
      %p309 = scmp.ne.s32.totalorder %s301, %s303
      %p310 = scmp.eq.s32.totalorder %s36, 1
      %p311 = por %p309, %p310
      %p312 = scmp.ne.s32.totalorder %s303, %s304
      %p313 = scmp.eq.s32.totalorder %s36, 0
      %p314 = por %p312, %p313
      %p315 = scmp.ne.s32.totalorder %s303, %s304
      %p316 = scmp.eq.s32.totalorder %s37, 1
      %p317 = por %p315, %p316
      %p319 = scmp.ne.s32.totalorder %s304, %s318
      %p320 = scmp.eq.s32.totalorder %s37, 0
      %p321 = por %p319, %p320
      %s323 = sadd.s32 %s322, 1
      %p326 = scmp.eq.s32.totalorder %s31, 1
      %p327 = scmp.ne.s32.totalorder %s322, %s324
      %p328 = scmp.eq.s32.totalorder %s31, 0
      %p329 = por %p327, %p328
      %p330 = scmp.ne.s32.totalorder %s322, %s324
      %p331 = scmp.eq.s32.totalorder %s36, 1
      %p332 = por %p330, %p331
      %p333 = scmp.ne.s32.totalorder %s324, %s325
      %p334 = scmp.eq.s32.totalorder %s36, 0
      %p335 = por %p333, %p334
      %p336 = scmp.ne.s32.totalorder %s324, %s325
      %p337 = scmp.eq.s32.totalorder %s37, 1
      %p338 = por %p336, %p337
      %p340 = scmp.ne.s32.totalorder %s325, %s339
      %p341 = scmp.eq.s32.totalorder %s37, 0
      %p342 = por %p340, %p341
      %s344 = sadd.s32 %s343, 1
      %p347 = scmp.eq.s32.totalorder %s31, 1
      %p348 = scmp.ne.s32.totalorder %s343, %s345
      %p349 = scmp.eq.s32.totalorder %s31, 0
      %p350 = por %p348, %p349
      %p351 = scmp.ne.s32.totalorder %s343, %s345
      %p352 = scmp.eq.s32.totalorder %s36, 1
      %p353 = por %p351, %p352
      %p354 = scmp.ne.s32.totalorder %s345, %s346
      %p355 = scmp.eq.s32.totalorder %s36, 0
      %p356 = por %p354, %p355
      %p357 = scmp.ne.s32.totalorder %s345, %s346
      %p358 = scmp.eq.s32.totalorder %s37, 1
      %p359 = por %p357, %p358
      %p361 = scmp.ne.s32.totalorder %s346, %s360
      %p362 = scmp.eq.s32.totalorder %s37, 0
      %p363 = por %p361, %p362
      %s365 = sadd.s32 %s364, 1
      %p368 = scmp.eq.s32.totalorder %s31, 1
      %p369 = scmp.ne.s32.totalorder %s364, %s366
      %p370 = scmp.eq.s32.totalorder %s31, 0
      %p371 = por %p369, %p370
      %p372 = scmp.ne.s32.totalorder %s364, %s366
      %p373 = scmp.eq.s32.totalorder %s36, 1
      %p374 = por %p372, %p373
      %p375 = scmp.ne.s32.totalorder %s366, %s367
      %p376 = scmp.eq.s32.totalorder %s36, 0
      %p377 = por %p375, %p376
      %p378 = scmp.ne.s32.totalorder %s366, %s367
      %p379 = scmp.eq.s32.totalorder %s37, 1
      %p380 = por %p378, %p379
      %p382 = scmp.ne.s32.totalorder %s367, %s381
      %p383 = scmp.eq.s32.totalorder %s37, 0
      %p384 = por %p382, %p383
      %s385 = ssub.s32 %s31, %s38
      %p386 = scmp.eq.s32.totalorder %s385, 0
      %s388 = sadd.s32 %s387, 1
      %s389 = scalar_select %p386, %s387, %s388
      %p392 = pneg %p386
      %p393 = scmp.eq.s32.totalorder %s31, 1
      %p394 = por %p392, %p393
      %p395 = scmp.ne.s32.totalorder %s387, %s390
      %p396 = scmp.eq.s32.totalorder %s31, 0
      %p397 = por %p395, %p396
      %p398 = scmp.ne.s32.totalorder %s387, %s390
      %p399 = scmp.eq.s32.totalorder %s36, 1
      %p400 = por %p398, %p399
      %p401 = scmp.ne.s32.totalorder %s390, %s391
      %p402 = scmp.eq.s32.totalorder %s36, 0
      %p403 = por %p401, %p402
      %p404 = scmp.ne.s32.totalorder %s390, %s391
      %p405 = scmp.eq.s32.totalorder %s37, 1
      %p406 = por %p404, %p405
      %p408 = scmp.ne.s32.totalorder %s391, %s407
      %p409 = scmp.eq.s32.totalorder %s37, 0
      %p410 = por %p408, %p409
      %p411 = scmp.le.s32.totalorder 1, %s31
      %p412 = scmp.lt.s32.totalorder %s31, 3
      %p413 = pnand %p411, %p412
      %p414 = pneg %p413
      // Predicated region
      $region9: #{tpu_custom_call.1} parent=5 // pred_check
        _
      $region10: #{tpu_custom_call.1} parent=5 // pred_check_branch
        %416 = sbr.rel (%p413) target = $region12
      $region11: #{tpu_custom_call.1} parent=5 // pred_region
        %s417 = ssub.s32 %s31, 1
        // Predicated region
        $region13: #{tpu_custom_call.1} parent=11 // pred_check
          %p418 = pneg %p104
        $region14: #{tpu_custom_call.1} parent=11 // pred_check_branch
          %420 = sbr.rel (%p418) target = $region16
        $region15: #{tpu_custom_call.1} parent=11 // pred_region
          _
        $region16: #{tpu_custom_call.1} parent=11 // pred_fallthru
          _
        // Predicated region
        $region17: #{tpu_custom_call.1} parent=11 // pred_check
          %p421 = pneg %p125
        $region18: #{tpu_custom_call.1} parent=11 // pred_check_branch
          %423 = sbr.rel (%p421) target = $region20
        $region19: #{tpu_custom_call.1} parent=11 // pred_region
          _
        $region20: #{tpu_custom_call.1} parent=11 // pred_fallthru
          _
        // Predicated region
        $region21: #{tpu_custom_call.1} parent=11 // pred_check
          %p424 = pneg %p146
        $region22: #{tpu_custom_call.1} parent=11 // pred_check_branch
          %426 = sbr.rel (%p424) target = $region24
        $region23: #{tpu_custom_call.1} parent=11 // pred_region
          _
        $region24: #{tpu_custom_call.1} parent=11 // pred_fallthru
          _
        // Predicated region
        $region25: #{tpu_custom_call.1} parent=11 // pred_check
          %p427 = pneg %p167
        $region26: #{tpu_custom_call.1} parent=11 // pred_check_branch
          %429 = sbr.rel (%p427) target = $region28
        $region27: #{tpu_custom_call.1} parent=11 // pred_region
          _
        $region28: #{tpu_custom_call.1} parent=11 // pred_fallthru
          _
        // Predicated region
        $region29: #{tpu_custom_call.1} parent=11 // pred_check
          %p430 = pneg %p188
        $region30: #{tpu_custom_call.1} parent=11 // pred_check_branch
          %432 = sbr.rel (%p430) target = $region32
        $region31: #{tpu_custom_call.1} parent=11 // pred_region
          _
        $region32: #{tpu_custom_call.1} parent=11 // pred_fallthru
          _
        // Predicated region
        $region33: #{tpu_custom_call.1} parent=11 // pred_check
          %p433 = pneg %p209
        $region34: #{tpu_custom_call.1} parent=11 // pred_check_branch
          %435 = sbr.rel (%p433) target = $region36
        $region35: #{tpu_custom_call.1} parent=11 // pred_region
          _
        $region36: #{tpu_custom_call.1} parent=11 // pred_fallthru
          _
        // Predicated region
        $region37: #{tpu_custom_call.1} parent=11 // pred_check
          %p436 = pneg %p230
        $region38: #{tpu_custom_call.1} parent=11 // pred_check_branch
          %438 = sbr.rel (%p436) target = $region40
        $region39: #{tpu_custom_call.1} parent=11 // pred_region
          _
        $region40: #{tpu_custom_call.1} parent=11 // pred_fallthru
          _
        // Predicated region
        $region41: #{tpu_custom_call.1} parent=11 // pred_check
          %p439 = pneg %p251
        $region42: #{tpu_custom_call.1} parent=11 // pred_check_branch
          %441 = sbr.rel (%p439) target = $region44
        $region43: #{tpu_custom_call.1} parent=11 // pred_region
          _
        $region44: #{tpu_custom_call.1} parent=11 // pred_fallthru
          _
        // Predicated region
        $region45: #{tpu_custom_call.1} parent=11 // pred_check
          %p442 = pneg %p272
        $region46: #{tpu_custom_call.1} parent=11 // pred_check_branch
          %444 = sbr.rel (%p442) target = $region48
        $region47: #{tpu_custom_call.1} parent=11 // pred_region
          _
        $region48: #{tpu_custom_call.1} parent=11 // pred_fallthru
          _
        // Predicated region
        $region49: #{tpu_custom_call.1} parent=11 // pred_check
          %p445 = pneg %p293
        $region50: #{tpu_custom_call.1} parent=11 // pred_check_branch
          %447 = sbr.rel (%p445) target = $region52
        $region51: #{tpu_custom_call.1} parent=11 // pred_region
          _
        $region52: #{tpu_custom_call.1} parent=11 // pred_fallthru
          _
        // Predicated region
        $region53: #{tpu_custom_call.1} parent=11 // pred_check
          %p448 = pneg %p314
        $region54: #{tpu_custom_call.1} parent=11 // pred_check_branch
          %450 = sbr.rel (%p448) target = $region56
        $region55: #{tpu_custom_call.1} parent=11 // pred_region
          _
        $region56: #{tpu_custom_call.1} parent=11 // pred_fallthru
          _
        // Predicated region
        $region57: #{tpu_custom_call.1} parent=11 // pred_check
          %p451 = pneg %p335
        $region58: #{tpu_custom_call.1} parent=11 // pred_check_branch
          %453 = sbr.rel (%p451) target = $region60
        $region59: #{tpu_custom_call.1} parent=11 // pred_region
          _
        $region60: #{tpu_custom_call.1} parent=11 // pred_fallthru
          _
        // Predicated region
        $region61: #{tpu_custom_call.1} parent=11 // pred_check
          %p454 = pneg %p356
        $region62: #{tpu_custom_call.1} parent=11 // pred_check_branch
          %456 = sbr.rel (%p454) target = $region64
        $region63: #{tpu_custom_call.1} parent=11 // pred_region
          _
        $region64: #{tpu_custom_call.1} parent=11 // pred_fallthru
          _
        // Predicated region
        $region65: #{tpu_custom_call.1} parent=11 // pred_check
          %p457 = pneg %p377
        $region66: #{tpu_custom_call.1} parent=11 // pred_check_branch
          %459 = sbr.rel (%p457) target = $region68
        $region67: #{tpu_custom_call.1} parent=11 // pred_region
          _
        $region68: #{tpu_custom_call.1} parent=11 // pred_fallthru
          _
      $region12: #{tpu_custom_call.1} parent=5 // pred_fallthru
        _
      %p460 = scmp.lt.s32.totalorder %s31, 2
      // Predicated region
      $region69: #{tpu_custom_call.1} parent=5 // pred_check
        %p461 = pneg %p460
      $region70: #{tpu_custom_call.1} parent=5 // pred_check_branch
        %463 = sbr.rel (%p461) target = $region72
      $region71: #{tpu_custom_call.1} parent=5 // pred_region
        // Predicated region
        $region73: #{tpu_custom_call.1} parent=71 // pred_check
          %p464 = pneg %p51
        $region74: #{tpu_custom_call.1} parent=71 // pred_check_branch
          %466 = sbr.rel (%p464) target = $region76
        $region75: #{tpu_custom_call.1} parent=71 // pred_region
          %s467 = sand.u32 %s41, 1
          %s468 = scalar_lea.sflag [#allocation3], %s467
          %s469 = sand.u32 %s41, 1
          %s470 = smul.addr %s469, 128
          %s471 = scalar_lea.vmem [#allocation2], %s470
          %473 = vsyncadd %s468, 0
          %s474 = smul.addr %s31, 16
          %s475 = smul.addr %s474, 8
          %s476 = scalar_lea.hbm %s0, %s475
          %s477 = sshll.u32 %s476, 4
          %s478 = int_to_ptr.hbm [resolvable:$true] %s477
          %s479 = sshll.u32 %s471, 4
          %s480 = int_to_ptr.vmem [resolvable:$true] %s479
          %485 = dma.hbm_to_vmem [thread:$0]  %s478, 2048, %s480, %s468, 256, 256, 16
        $region76: #{tpu_custom_call.1} parent=71 // pred_fallthru
          _
        // Predicated region
        $region77: #{tpu_custom_call.1} parent=71 // pred_check
          %p486 = pneg %p77
        $region78: #{tpu_custom_call.1} parent=71 // pred_check_branch
          %488 = sbr.rel (%p486) target = $region80
        $region79: #{tpu_custom_call.1} parent=71 // pred_region
          %s489 = sand.u32 %s67, 1
          %s490 = scalar_lea.sflag [#allocation6], %s489
          %s491 = sand.u32 %s67, 1
          %s492 = smul.addr %s491, 128
          %s493 = scalar_lea.vmem [#allocation5], %s492
          %495 = vsyncadd %s490, 0
          %s496 = smul.addr %s31, 16
          %s497 = smul.addr %s496, 8
          %s498 = scalar_lea.hbm %s1, %s497
          %s499 = sshll.u32 %s498, 4
          %s500 = int_to_ptr.hbm [resolvable:$true] %s499
          %s501 = sshll.u32 %s493, 4
          %s502 = int_to_ptr.vmem [resolvable:$true] %s501
          %507 = dma.hbm_to_vmem [thread:$0]  %s500, 2048, %s502, %s490, 256, 256, 16
        $region80: #{tpu_custom_call.1} parent=71 // pred_fallthru
          _
      $region72: #{tpu_custom_call.1} parent=5 // pred_fallthru
        _
      %p508 = scmp.le.s32.totalorder 1, %s31
      %p509 = scmp.lt.s32.totalorder %s31, 3
      %p510 = pnand %p508, %p509
      %p511 = pneg %p510
      // Predicated region
      $region81: #{tpu_custom_call.1} parent=5 // pred_check
        _
      $region82: #{tpu_custom_call.1} parent=5 // pred_check_branch
        %513 = sbr.rel (%p510) target = $region84
      $region83: #{tpu_custom_call.1} parent=5 // pred_region
        %s514 = ssub.s32 %s31, 1
        %s515 = sand.u32 %s44, 1
        %s516 = scalar_lea.sflag [#allocation3], %s515
        %s517 = sand.u32 %s44, 1
        %s518 = smul.addr %s517, 128
        %s519 = scalar_lea.vmem [#allocation2], %s518
        // Predicated region
        $region85: #{tpu_custom_call.1} parent=83 // pred_check
          %p520 = pneg %p57
        $region86: #{tpu_custom_call.1} parent=83 // pred_check_branch
          %522 = sbr.rel (%p520) target = $region88
        $region87: #{tpu_custom_call.1} parent=83 // pred_region
          %524 = dma.done %s516, 2048
        $region88: #{tpu_custom_call.1} parent=83 // pred_fallthru
          _
        %s525 = sand.u32 %s70, 1
        %s526 = scalar_lea.sflag [#allocation6], %s525
        %s527 = sand.u32 %s70, 1
        %s528 = smul.addr %s527, 128
        %s529 = scalar_lea.vmem [#allocation5], %s528
        // Predicated region
        $region89: #{tpu_custom_call.1} parent=83 // pred_check
          %p530 = pneg %p83
        $region90: #{tpu_custom_call.1} parent=83 // pred_check_branch
          %532 = sbr.rel (%p530) target = $region92
        $region91: #{tpu_custom_call.1} parent=83 // pred_region
          %534 = dma.done %s526, 2048
        $region92: #{tpu_custom_call.1} parent=83 // pred_fallthru
          _
        %s535 = sand.u32 %s44, 1
        %s536 = scalar_lea.sflag [#allocation3], %s535
        %s537 = sand.u32 %s44, 1
        %s538 = smul.addr %s537, 128
        %s539 = scalar_lea.vmem [#allocation2], %s538
        %p540 = pneg %p57
        %p541 = pneg %p54
        %s542 = sand.u32 %s70, 1
        %s543 = scalar_lea.sflag [#allocation6], %s542
        %s544 = sand.u32 %s70, 1
        %s545 = smul.addr %s544, 128
        %s546 = scalar_lea.vmem [#allocation5], %s545
        %p547 = pneg %p83
        %p548 = pneg %p80
        %p549 = pneg %p104
        %p550 = pneg %p101
        %p551 = pneg %p125
        %p552 = pneg %p122
        %p553 = pneg %p146
        %p554 = pneg %p143
        %p555 = pneg %p167
        %p556 = pneg %p164
        %p557 = pneg %p188
        %p558 = pneg %p185
        %p559 = pneg %p209
        %p560 = pneg %p206
        %p561 = pneg %p230
        %p562 = pneg %p227
        %p563 = pneg %p251
        %p564 = pneg %p248
        %p565 = pneg %p272
        %p566 = pneg %p269
        %p567 = pneg %p293
        %p568 = pneg %p290
        %p569 = pneg %p314
        %p570 = pneg %p311
        %p571 = pneg %p335
        %p572 = pneg %p332
        %p573 = pneg %p356
        %p574 = pneg %p353
        %p575 = pneg %p377
        %p576 = pneg %p374
        %p577 = pneg %p403
        %p578 = pneg %p400
        %s579 = sand.u32 %s390, 1
        %s580 = scalar_lea.sflag [#allocation4], %s579
        %s581 = sand.u32 %s390, 1
        %s582 = smul.addr %s581, 128
        %s583 = scalar_lea.vmem [#allocation7], %s582
        %v585 = vld [vmem:[%s519] sm:$0xff]
        %v586 = vld [vmem:[%s519 + $0x8] sm:$0xff]
        %v587 = vld [vmem:[%s519 + $0x10] sm:$0xff]
        %v588 = vld [vmem:[%s519 + $0x18] sm:$0xff]
        %v589 = vld [vmem:[%s519 + $0x20] sm:$0xff]
        %v590 = vld [vmem:[%s519 + $0x28] sm:$0xff]
        %v591 = vld [vmem:[%s519 + $0x30] sm:$0xff]
        %v592 = vld [vmem:[%s519 + $0x38] sm:$0xff]
        %v593 = vld [vmem:[%s519 + $0x40] sm:$0xff]
        %v594 = vld [vmem:[%s519 + $0x48] sm:$0xff]
        %v595 = vld [vmem:[%s519 + $0x50] sm:$0xff]
        %v596 = vld [vmem:[%s519 + $0x58] sm:$0xff]
        %v597 = vld [vmem:[%s519 + $0x60] sm:$0xff]
        %v598 = vld [vmem:[%s519 + $0x68] sm:$0xff]
        %v599 = vld [vmem:[%s519 + $0x70] sm:$0xff]
        %v600 = vld [vmem:[%s519 + $0x78] sm:$0xff]
        %v601 = vld [vmem:[%s529] sm:$0xff]
        %v602 = vld [vmem:[%s529 + $0x8] sm:$0xff]
        %v603 = vld [vmem:[%s529 + $0x10] sm:$0xff]
        %v604 = vld [vmem:[%s529 + $0x18] sm:$0xff]
        %v605 = vld [vmem:[%s529 + $0x20] sm:$0xff]
        %v606 = vld [vmem:[%s529 + $0x28] sm:$0xff]
        %v607 = vld [vmem:[%s529 + $0x30] sm:$0xff]
        %v608 = vld [vmem:[%s529 + $0x38] sm:$0xff]
        %v609 = vld [vmem:[%s529 + $0x40] sm:$0xff]
        %v610 = vld [vmem:[%s529 + $0x48] sm:$0xff]
        %v611 = vld [vmem:[%s529 + $0x50] sm:$0xff]
        %v612 = vld [vmem:[%s529 + $0x58] sm:$0xff]
        %v613 = vld [vmem:[%s529 + $0x60] sm:$0xff]
        %v614 = vld [vmem:[%s529 + $0x68] sm:$0xff]
        %v615 = vld [vmem:[%s529 + $0x70] sm:$0xff]
        %v616 = vld [vmem:[%s529 + $0x78] sm:$0xff]
        %v617 = vpack.c.bf16 %v587, %v585
        %v618 = vpack.c.bf16 %v588, %v586
        %v619 = vpack.c.bf16 %v591, %v589
        %v620 = vpack.c.bf16 %v592, %v590
        %v621 = vpack.c.bf16 %v595, %v593
        %v622 = vpack.c.bf16 %v596, %v594
        %v623 = vpack.c.bf16 %v599, %v597
        %v624 = vpack.c.bf16 %v600, %v598
        %v625 = vpack.c.bf16 %v603, %v601
        %v626 = vpack.c.bf16 %v604, %v602
        %v627 = vpack.c.bf16 %v607, %v605
        %v628 = vpack.c.bf16 %v608, %v606
        %v629 = vpack.c.bf16 %v611, %v609
        %v630 = vpack.c.bf16 %v612, %v610
        %v631 = vpack.c.bf16 %v615, %v613
        %v632 = vpack.c.bf16 %v616, %v614
        %v633 = vadd.f32 %v585, %v586
        %634 = vadd.xlane.f32.xlu0 %v633
        %v635 = vpop.xlane.xlu0 %634
        %v636 = vadd.f32 %v587, %v588
        %637 = vadd.xlane.f32.xlu0 %v636
        %v638 = vpop.xlane.xlu0 %637
        %v639 = vadd.f32 %v589, %v590
        %640 = vadd.xlane.f32.xlu0 %v639
        %v641 = vpop.xlane.xlu0 %640
        %v642 = vadd.f32 %v591, %v592
        %643 = vadd.xlane.f32.xlu0 %v642
        %v644 = vpop.xlane.xlu0 %643
        %v645 = vadd.f32 %v593, %v594
        %646 = vadd.xlane.f32.xlu0 %v645
        %v647 = vpop.xlane.xlu0 %646
        %v648 = vadd.f32 %v595, %v596
        %649 = vadd.xlane.f32.xlu0 %v648
        %v650 = vpop.xlane.xlu0 %649
        %v651 = vadd.f32 %v597, %v598
        %652 = vadd.xlane.f32.xlu0 %v651
        %v653 = vpop.xlane.xlu0 %652
        %v654 = vadd.f32 %v599, %v600
        %655 = vadd.xlane.f32.xlu0 %v654
        %v656 = vpop.xlane.xlu0 %655
        %v657 = vmul.f32 %v635, 0.00390625
        %v658 = vmul.f32 %v638, 0.00390625
        %v659 = vmul.f32 %v641, 0.00390625
        %v660 = vmul.f32 %v644, 0.00390625
        %v661 = vmul.f32 %v647, 0.00390625
        %v662 = vmul.f32 %v650, 0.00390625
        %v663 = vmul.f32 %v653, 0.00390625
        %v664 = vmul.f32 %v656, 0.00390625
        %v665 = vpack.c.bf16 %v658, %v657
        %v666 = vpack.c.bf16 %v660, %v659
        %v667 = vpack.c.bf16 %v662, %v661
        %v668 = vpack.c.bf16 %v664, %v663
        %v669 = vadd.f32 %v601, %v602
        %670 = vadd.xlane.f32.xlu0 %v669
        %v671 = vpop.xlane.xlu0 %670
        %v672 = vadd.f32 %v603, %v604
        %673 = vadd.xlane.f32.xlu0 %v672
        %v674 = vpop.xlane.xlu0 %673
        %v675 = vadd.f32 %v605, %v606
        %676 = vadd.xlane.f32.xlu0 %v675
        %v677 = vpop.xlane.xlu0 %676
        %v678 = vadd.f32 %v607, %v608
        %679 = vadd.xlane.f32.xlu0 %v678
        %v680 = vpop.xlane.xlu0 %679
        %v681 = vadd.f32 %v609, %v610
        %682 = vadd.xlane.f32.xlu0 %v681
        %v683 = vpop.xlane.xlu0 %682
        %v684 = vadd.f32 %v611, %v612
        %685 = vadd.xlane.f32.xlu0 %v684
        %v686 = vpop.xlane.xlu0 %685
        %v687 = vadd.f32 %v613, %v614
        %688 = vadd.xlane.f32.xlu0 %v687
        %v689 = vpop.xlane.xlu0 %688
        %v690 = vadd.f32 %v615, %v616
        %691 = vadd.xlane.f32.xlu0 %v690
        %v692 = vpop.xlane.xlu0 %691
        %v693 = vmul.f32 %v671, 0.00390625
        %v694 = vmul.f32 %v674, 0.00390625
        %v695 = vmul.f32 %v677, 0.00390625
        %v696 = vmul.f32 %v680, 0.00390625
        %v697 = vmul.f32 %v683, 0.00390625
        %v698 = vmul.f32 %v686, 0.00390625
        %v699 = vmul.f32 %v689, 0.00390625
        %v700 = vmul.f32 %v692, 0.00390625
        %v701 = vpack.c.bf16 %v694, %v693
        %v702 = vpack.c.bf16 %v696, %v695
        %v703 = vpack.c.bf16 %v698, %v697
        %v704 = vpack.c.bf16 %v700, %v699
        %v705 = vld [vmem:[%s9] sm:$0xf]
        %v706 = vld [vmem:[%s9 + $0x4] sm:$0xf]
        %v707 = vld [vmem:[%s10] sm:$0xff]
        %v708 = vld [vmem:[%s10 + $0x8] sm:$0xff]
        %v711 = vunpack.c.l.b16 %v705
        %v712 = vunpack.c.l.b16 %v706
        %v713 = vpack.c.b16 %v712, %v711
        %vm714 = vcmask 523264
        %v716 = vsel %vm714, %v713, 0
        %718 = vmatpush.bf16.msra.mxu0 0
        %719 = vmatpush.bf16.msra.mxu0 0
        %720 = vmatpush.bf16.msra.mxu0 0
        %721 = vmatpush.bf16.msra.mxu0 0
        %722 = vmatpush.bf16.msra.mxu0 %v668
        %723 = vmatpush.bf16.msra.mxu0 %v667
        %724 = vmatpush.bf16.msra.mxu0 %v666
        %725 = vmatpush.bf16.msra.mxu0 %v665
        %726 = vmatmul.bf16.gmra.mxu0 %v716
        %v727 = vpop.f32.mrf.mxu0
        %v728 = vadd.f32 %v707, %v727
        %v729 = vpop.f32.mrf.mxu0
        %v730 = vadd.f32 %v708, %v729
        %731 = vdwg.mxu0
        %v732 = vmax.f32 %v728, 0.0
        %v733 = vmax.f32 %v730, 0.0
        %v734 = vld [vmem:[%s11] sm:$0xf]
        %v735 = vld [vmem:[%s11 + $0x4] sm:$0xf]
        %v736 = vld [vmem:[%s12] sm:$0xff]
        %v737 = vld [vmem:[%s12 + $0x8] sm:$0xff]
        %v740 = vunpack.c.l.b16 %v734
        %v741 = vunpack.c.l.b16 %v735
        %v742 = vpack.c.b16 %v741, %v740
        %v744 = vsel %vm714, %v742, 0
        %746 = vmatpush.bf16.msra.mxu0 0
        %747 = vmatpush.bf16.msra.mxu0 0
        %748 = vmatpush.bf16.msra.mxu0 0
        %749 = vmatpush.bf16.msra.mxu0 0
        %750 = vmatpush.bf16.msra.mxu0 %v704
        %751 = vmatpush.bf16.msra.mxu0 %v703
        %752 = vmatpush.bf16.msra.mxu0 %v702
        %753 = vmatpush.bf16.msra.mxu0 %v701
        %754 = vmatmul.bf16.gmra.mxu0 %v744
        %v755 = vpop.f32.mrf.mxu0
        %v756 = vadd.f32 %v736, %v755
        %v757 = vpop.f32.mrf.mxu0
        %v758 = vadd.f32 %v737, %v757
        %759 = vdwg.mxu0
        %v760 = vmax.f32 %v756, 0.0
        %v761 = vmax.f32 %v758, 0.0
        %v762 = vld [vmem:[%s13] sm:$0xf]
        %v763 = vld [vmem:[%s13 + $0x4] sm:$0xf]
        %v764 = vld [vmem:[%s13 + $0x8] sm:$0xf]
        %v765 = vld [vmem:[%s13 + $0xc] sm:$0xf]
        %v766 = vld [vmem:[%s13 + $0x10] sm:$0xf]
        %v767 = vld [vmem:[%s13 + $0x14] sm:$0xf]
        %v768 = vld [vmem:[%s13 + $0x18] sm:$0xf]
        %v769 = vld [vmem:[%s13 + $0x1c] sm:$0xf]
        %v770 = vpack.c.bf16 %v733, %v732
        %v771 = vld [vmem:[%s14] sm:$0xf]
        %v772 = vld [vmem:[%s14 + $0x4] sm:$0xf]
        %v773 = vld [vmem:[%s14 + $0x8] sm:$0xf]
        %v774 = vld [vmem:[%s14 + $0xc] sm:$0xf]
        %v775 = vld [vmem:[%s14 + $0x10] sm:$0xf]
        %v776 = vld [vmem:[%s14 + $0x14] sm:$0xf]
        %v777 = vld [vmem:[%s14 + $0x18] sm:$0xf]
        %v778 = vld [vmem:[%s14 + $0x1c] sm:$0xf]
        %v779 = vpack.c.bf16 %v761, %v760
        %v788 = vunpack.c.l.b16 %v771
        %v789 = vunpack.c.l.b16 %v772
        %v790 = vunpack.c.l.b16 %v773
        %v791 = vunpack.c.l.b16 %v774
        %v792 = vunpack.c.l.b16 %v775
        %v793 = vunpack.c.l.b16 %v776
        %v794 = vunpack.c.l.b16 %v777
        %v795 = vunpack.c.l.b16 %v778
        %v796 = vpack.c.b16 %v789, %v788
        %v797 = vpack.c.b16 %v791, %v790
        %v798 = vpack.c.b16 %v793, %v792
        %v799 = vpack.c.b16 %v795, %v794
        %vm800 = vcmask 130048
        %v802 = vsel %vm800, %v796, 0
        %v805 = vsel %vm800, %v797, 0
        %v808 = vsel %vm800, %v798, 0
        %v811 = vsel %vm800, %v799, 0
        %813 = vmatpush.bf16.msra.mxu0 0
        %814 = vmatpush.bf16.msra.mxu0 0
        %815 = vmatpush.bf16.msra.mxu0 0
        %816 = vmatpush.bf16.msra.mxu0 0
        %817 = vmatpush.bf16.msra.mxu0 0
        %818 = vmatpush.bf16.msra.mxu0 0
        %819 = vmatpush.bf16.msra.mxu0 0
        %820 = vmatpush.bf16.msra.mxu0 %v779
        %821 = vmatmul.bf16.gmra.mxu0 %v802
        %v822 = vpop.f32.mrf.mxu0
        %v823 = vadd.f32 0.0, %v822
        %v824 = vpop.f32.mrf.mxu0
        %v825 = vadd.f32 0.0, %v824
        %826 = vmatmul.bf16.gmra.mxu0 %v805
        %v827 = vpop.f32.mrf.mxu0
        %v828 = vadd.f32 0.0, %v827
        %v829 = vpop.f32.mrf.mxu0
        %v830 = vadd.f32 0.0, %v829
        %831 = vmatmul.bf16.gmra.mxu0 %v808
        %v832 = vpop.f32.mrf.mxu0
        %v833 = vadd.f32 0.0, %v832
        %v834 = vpop.f32.mrf.mxu0
        %v835 = vadd.f32 0.0, %v834
        %836 = vmatmul.bf16.gmra.mxu0 %v811
        %v837 = vpop.f32.mrf.mxu0
        %v838 = vadd.f32 0.0, %v837
        %v839 = vpop.f32.mrf.mxu0
        %v840 = vadd.f32 0.0, %v839
        %841 = vdwg.mxu0
        %v850 = vunpack.c.l.b16 %v762
        %v851 = vunpack.c.l.b16 %v763
        %v852 = vunpack.c.l.b16 %v764
        %v853 = vunpack.c.l.b16 %v765
        %v854 = vunpack.c.l.b16 %v766
        %v855 = vunpack.c.l.b16 %v767
        %v856 = vunpack.c.l.b16 %v768
        %v857 = vunpack.c.l.b16 %v769
        %v858 = vpack.c.b16 %v851, %v850
        %v859 = vpack.c.b16 %v853, %v852
        %v860 = vpack.c.b16 %v855, %v854
        %v861 = vpack.c.b16 %v857, %v856
        %v863 = vsel %vm800, %v858, 0
        %v866 = vsel %vm800, %v859, 0
        %v869 = vsel %vm800, %v860, 0
        %v872 = vsel %vm800, %v861, 0
        %874 = vmatpush.bf16.msra.mxu0 0
        %875 = vmatpush.bf16.msra.mxu0 0
        %876 = vmatpush.bf16.msra.mxu0 0
        %877 = vmatpush.bf16.msra.mxu0 0
        %878 = vmatpush.bf16.msra.mxu0 0
        %879 = vmatpush.bf16.msra.mxu0 0
        %880 = vmatpush.bf16.msra.mxu0 0
        %881 = vmatpush.bf16.msra.mxu0 %v770
        %882 = vmatmul.bf16.gmra.mxu0 %v863
        %v883 = vpop.f32.mrf.mxu0
        %v884 = vadd.f32 %v823, %v883
        %v885 = vpop.f32.mrf.mxu0
        %v886 = vadd.f32 %v825, %v885
        %887 = vmatmul.bf16.gmra.mxu0 %v866
        %v888 = vpop.f32.mrf.mxu0
        %v889 = vadd.f32 %v828, %v888
        %v890 = vpop.f32.mrf.mxu0
        %v891 = vadd.f32 %v830, %v890
        %892 = vmatmul.bf16.gmra.mxu0 %v869
        %v893 = vpop.f32.mrf.mxu0
        %v894 = vadd.f32 %v833, %v893
        %v895 = vpop.f32.mrf.mxu0
        %v896 = vadd.f32 %v835, %v895
        %897 = vmatmul.bf16.gmra.mxu0 %v872
        %v898 = vpop.f32.mrf.mxu0
        %v899 = vadd.f32 %v838, %v898
        %v900 = vpop.f32.mrf.mxu0
        %v901 = vadd.f32 %v840, %v900
        %902 = vdwg.mxu0
        %v903 = vld [vmem:[%s15] sm:$0xff]
        %v904 = vld [vmem:[%s15 + $0x8] sm:$0xff]
        %v905 = vld [vmem:[%s15 + $0x10] sm:$0xff]
        %v906 = vld [vmem:[%s15 + $0x18] sm:$0xff]
        %v907 = vld [vmem:[%s15 + $0x20] sm:$0xff]
        %v908 = vld [vmem:[%s15 + $0x28] sm:$0xff]
        %v909 = vld [vmem:[%s15 + $0x30] sm:$0xff]
        %v910 = vld [vmem:[%s15 + $0x38] sm:$0xff]
        %v911 = vadd.f32 %v884, %v903
        %v912 = vadd.f32 %v886, %v904
        %v913 = vadd.f32 %v889, %v905
        %v914 = vadd.f32 %v891, %v906
        %v915 = vadd.f32 %v894, %v907
        %v916 = vadd.f32 %v896, %v908
        %v917 = vadd.f32 %v899, %v909
        %v918 = vadd.f32 %v901, %v910
        %v919 = vld [vmem:[%s2] sm:$0xf]
        %v920 = vld [vmem:[%s2 + $0x4] sm:$0xf]
        %v921 = vld [vmem:[%s3] sm:$0xff]
        %v922 = vld [vmem:[%s3 + $0x8] sm:$0xff]
        %924 = vset.pattern.permute.xlu0 0
        %925 = vperm.xlu0 %924, %v921
        %v926 = vpop.permute.xlu0 %925
        %929 = vset.pattern.permute.xlu0 0
        %930 = vperm.xlu0 %929, %v922
        %v931 = vpop.permute.xlu0 %930
        %v935 = vunpack.c.l.b16 %v919
        %v936 = vunpack.c.l.b16 %v920
        %v937 = vpack.c.b16 %v936, %v935
        %v939 = vsel %vm714, %v937, 0
        %941 = vmatpush.bf16.msra.mxu0 0
        %942 = vmatpush.bf16.msra.mxu0 0
        %943 = vmatpush.bf16.msra.mxu0 0
        %944 = vmatpush.bf16.msra.mxu0 0
        %945 = vmatpush.bf16.msra.mxu0 %v623
        %946 = vmatpush.bf16.msra.mxu0 %v621
        %947 = vmatpush.bf16.msra.mxu0 %v619
        %948 = vmatpush.bf16.msra.mxu0 %v617
        %949 = vmatmul.bf16.gmra.mxu0 %v939
        %v950 = vpop.f32.mrf.mxu0
        %v951 = vadd.f32 %v926, %v950
        %v952 = vpop.f32.mrf.mxu0
        %v953 = vadd.f32 %v931, %v952
        %954 = vdwg.mxu0
        %955 = vmatpush.bf16.msra.mxu0 0
        %956 = vmatpush.bf16.msra.mxu0 0
        %957 = vmatpush.bf16.msra.mxu0 0
        %958 = vmatpush.bf16.msra.mxu0 0
        %959 = vmatpush.bf16.msra.mxu0 %v624
        %960 = vmatpush.bf16.msra.mxu0 %v622
        %961 = vmatpush.bf16.msra.mxu0 %v620
        %962 = vmatpush.bf16.msra.mxu0 %v618
        %963 = vmatmul.bf16.gmra.mxu0 %v939
        %v964 = vpop.f32.mrf.mxu0
        %v965 = vadd.f32 %v926, %v964
        %v966 = vpop.f32.mrf.mxu0
        %v967 = vadd.f32 %v931, %v966
        %968 = vdwg.mxu0
        %v969 = vmax.f32 %v951, 0.0
        %v970 = vmax.f32 %v965, 0.0
        %v971 = vmax.f32 %v953, 0.0
        %v972 = vmax.f32 %v967, 0.0
        %v973 = vld [vmem:[%s4] sm:$0xf]
        %v974 = vld [vmem:[%s4 + $0x4] sm:$0xf]
        %v975 = vld [vmem:[%s5] sm:$0xff]
        %v976 = vld [vmem:[%s5 + $0x8] sm:$0xff]
        %978 = vset.pattern.permute.xlu0 0
        %979 = vperm.xlu0 %978, %v975
        %v980 = vpop.permute.xlu0 %979
        %983 = vset.pattern.permute.xlu0 0
        %984 = vperm.xlu0 %983, %v976
        %v985 = vpop.permute.xlu0 %984
        %v989 = vunpack.c.l.b16 %v973
        %v990 = vunpack.c.l.b16 %v974
        %v991 = vpack.c.b16 %v990, %v989
        %v993 = vsel %vm714, %v991, 0
        %995 = vmatpush.bf16.msra.mxu0 0
        %996 = vmatpush.bf16.msra.mxu0 0
        %997 = vmatpush.bf16.msra.mxu0 0
        %998 = vmatpush.bf16.msra.mxu0 0
        %999 = vmatpush.bf16.msra.mxu0 %v631
        %1000 = vmatpush.bf16.msra.mxu0 %v629
        %1001 = vmatpush.bf16.msra.mxu0 %v627
        %1002 = vmatpush.bf16.msra.mxu0 %v625
        %1003 = vmatmul.bf16.gmra.mxu0 %v993
        %v1004 = vpop.f32.mrf.mxu0
        %v1005 = vadd.f32 %v980, %v1004
        %v1006 = vpop.f32.mrf.mxu0
        %v1007 = vadd.f32 %v985, %v1006
        %1008 = vdwg.mxu0
        %1009 = vmatpush.bf16.msra.mxu0 0
        %1010 = vmatpush.bf16.msra.mxu0 0
        %1011 = vmatpush.bf16.msra.mxu0 0
        %1012 = vmatpush.bf16.msra.mxu0 0
        %1013 = vmatpush.bf16.msra.mxu0 %v632
        %1014 = vmatpush.bf16.msra.mxu0 %v630
        %1015 = vmatpush.bf16.msra.mxu0 %v628
        %1016 = vmatpush.bf16.msra.mxu0 %v626
        %1017 = vmatmul.bf16.gmra.mxu0 %v993
        %v1018 = vpop.f32.mrf.mxu0
        %v1019 = vadd.f32 %v980, %v1018
        %v1020 = vpop.f32.mrf.mxu0
        %v1021 = vadd.f32 %v985, %v1020
        %1022 = vdwg.mxu0
        %v1023 = vmax.f32 %v1005, 0.0
        %v1024 = vmax.f32 %v1019, 0.0
        %v1025 = vmax.f32 %v1007, 0.0
        %v1026 = vmax.f32 %v1021, 0.0
        %v1027 = vld [vmem:[%s6] sm:$0xf]
        %v1028 = vld [vmem:[%s6 + $0x4] sm:$0xf]
        %v1029 = vld [vmem:[%s6 + $0x8] sm:$0xf]
        %v1030 = vld [vmem:[%s6 + $0xc] sm:$0xf]
        %v1031 = vld [vmem:[%s6 + $0x10] sm:$0xf]
        %v1032 = vld [vmem:[%s6 + $0x14] sm:$0xf]
        %v1033 = vld [vmem:[%s6 + $0x18] sm:$0xf]
        %v1034 = vld [vmem:[%s6 + $0x1c] sm:$0xf]
        %v1035 = vpack.c.bf16 %v971, %v969
        %v1036 = vpack.c.bf16 %v972, %v970
        %v1037 = vld [vmem:[%s7] sm:$0xf]
        %v1038 = vld [vmem:[%s7 + $0x4] sm:$0xf]
        %v1039 = vld [vmem:[%s7 + $0x8] sm:$0xf]
        %v1040 = vld [vmem:[%s7 + $0xc] sm:$0xf]
        %v1041 = vld [vmem:[%s7 + $0x10] sm:$0xf]
        %v1042 = vld [vmem:[%s7 + $0x14] sm:$0xf]
        %v1043 = vld [vmem:[%s7 + $0x18] sm:$0xf]
        %v1044 = vld [vmem:[%s7 + $0x1c] sm:$0xf]
        %v1045 = vpack.c.bf16 %v1025, %v1023
        %v1046 = vpack.c.bf16 %v1026, %v1024
        %v1055 = vunpack.c.l.b16 %v1037
        %v1056 = vunpack.c.l.b16 %v1038
        %v1057 = vunpack.c.l.b16 %v1039
        %v1058 = vunpack.c.l.b16 %v1040
        %v1059 = vunpack.c.l.b16 %v1041
        %v1060 = vunpack.c.l.b16 %v1042
        %v1061 = vunpack.c.l.b16 %v1043
        %v1062 = vunpack.c.l.b16 %v1044
        %v1063 = vpack.c.b16 %v1056, %v1055
        %v1064 = vpack.c.b16 %v1058, %v1057
        %v1065 = vpack.c.b16 %v1060, %v1059
        %v1066 = vpack.c.b16 %v1062, %v1061
        %v1068 = vsel %vm800, %v1063, 0
        %v1071 = vsel %vm800, %v1064, 0
        %v1074 = vsel %vm800, %v1065, 0
        %v1077 = vsel %vm800, %v1066, 0
        %1079 = vmatpush.bf16.msra.mxu0 0
        %1080 = vmatpush.bf16.msra.mxu0 0
        %1081 = vmatpush.bf16.msra.mxu0 0
        %1082 = vmatpush.bf16.msra.mxu0 0
        %1083 = vmatpush.bf16.msra.mxu0 0
        %1084 = vmatpush.bf16.msra.mxu0 0
        %1085 = vmatpush.bf16.msra.mxu0 0
        %1086 = vmatpush.bf16.msra.mxu0 %v1045
        %1087 = vmatmul.bf16.gmra.mxu0 %v1068
        %v1088 = vpop.f32.mrf.mxu0
        %v1089 = vadd.f32 0.0, %v1088
        %v1090 = vpop.f32.mrf.mxu0
        %v1091 = vadd.f32 0.0, %v1090
        %1092 = vmatmul.bf16.gmra.mxu0 %v1071
        %v1093 = vpop.f32.mrf.mxu0
        %v1094 = vadd.f32 0.0, %v1093
        %v1095 = vpop.f32.mrf.mxu0
        %v1096 = vadd.f32 0.0, %v1095
        %1097 = vmatmul.bf16.gmra.mxu0 %v1074
        %v1098 = vpop.f32.mrf.mxu0
        %v1099 = vadd.f32 0.0, %v1098
        %v1100 = vpop.f32.mrf.mxu0
        %v1101 = vadd.f32 0.0, %v1100
        %1102 = vmatmul.bf16.gmra.mxu0 %v1077
        %v1103 = vpop.f32.mrf.mxu0
        %v1104 = vadd.f32 0.0, %v1103
        %v1105 = vpop.f32.mrf.mxu0
        %v1106 = vadd.f32 0.0, %v1105
        %1107 = vdwg.mxu0
        %1108 = vmatpush.bf16.msra.mxu0 0
        %1109 = vmatpush.bf16.msra.mxu0 0
        %1110 = vmatpush.bf16.msra.mxu0 0
        %1111 = vmatpush.bf16.msra.mxu0 0
        %1112 = vmatpush.bf16.msra.mxu0 0
        %1113 = vmatpush.bf16.msra.mxu0 0
        %1114 = vmatpush.bf16.msra.mxu0 0
        %1115 = vmatpush.bf16.msra.mxu0 %v1046
        %1116 = vmatmul.bf16.gmra.mxu0 %v1068
        %v1117 = vpop.f32.mrf.mxu0
        %v1118 = vadd.f32 0.0, %v1117
        %v1119 = vpop.f32.mrf.mxu0
        %v1120 = vadd.f32 0.0, %v1119
        %1121 = vmatmul.bf16.gmra.mxu0 %v1071
        %v1122 = vpop.f32.mrf.mxu0
        %v1123 = vadd.f32 0.0, %v1122
        %v1124 = vpop.f32.mrf.mxu0
        %v1125 = vadd.f32 0.0, %v1124
        %1126 = vmatmul.bf16.gmra.mxu0 %v1074
        %v1127 = vpop.f32.mrf.mxu0
        %v1128 = vadd.f32 0.0, %v1127
        %v1129 = vpop.f32.mrf.mxu0
        %v1130 = vadd.f32 0.0, %v1129
        %1131 = vmatmul.bf16.gmra.mxu0 %v1077
        %v1132 = vpop.f32.mrf.mxu0
        %v1133 = vadd.f32 0.0, %v1132
        %v1134 = vpop.f32.mrf.mxu0
        %v1135 = vadd.f32 0.0, %v1134
        %1136 = vdwg.mxu0
        %v1145 = vunpack.c.l.b16 %v1027
        %v1146 = vunpack.c.l.b16 %v1028
        %v1147 = vunpack.c.l.b16 %v1029
        %v1148 = vunpack.c.l.b16 %v1030
        %v1149 = vunpack.c.l.b16 %v1031
        %v1150 = vunpack.c.l.b16 %v1032
        %v1151 = vunpack.c.l.b16 %v1033
        %v1152 = vunpack.c.l.b16 %v1034
        %v1153 = vpack.c.b16 %v1146, %v1145
        %v1154 = vpack.c.b16 %v1148, %v1147
        %v1155 = vpack.c.b16 %v1150, %v1149
        %v1156 = vpack.c.b16 %v1152, %v1151
        %v1158 = vsel %vm800, %v1153, 0
        %v1161 = vsel %vm800, %v1154, 0
        %v1164 = vsel %vm800, %v1155, 0
        %v1167 = vsel %vm800, %v1156, 0
        %1169 = vmatpush.bf16.msra.mxu0 0
        %1170 = vmatpush.bf16.msra.mxu0 0
        %1171 = vmatpush.bf16.msra.mxu0 0
        %1172 = vmatpush.bf16.msra.mxu0 0
        %1173 = vmatpush.bf16.msra.mxu0 0
        %1174 = vmatpush.bf16.msra.mxu0 0
        %1175 = vmatpush.bf16.msra.mxu0 0
        %1176 = vmatpush.bf16.msra.mxu0 %v1035
        %1177 = vmatmul.bf16.gmra.mxu0 %v1158
        %v1178 = vpop.f32.mrf.mxu0
        %v1179 = vadd.f32 %v1089, %v1178
        %v1180 = vpop.f32.mrf.mxu0
        %v1181 = vadd.f32 %v1091, %v1180
        %1182 = vmatmul.bf16.gmra.mxu0 %v1161
        %v1183 = vpop.f32.mrf.mxu0
        %v1184 = vadd.f32 %v1094, %v1183
        %v1185 = vpop.f32.mrf.mxu0
        %v1186 = vadd.f32 %v1096, %v1185
        %1187 = vmatmul.bf16.gmra.mxu0 %v1164
        %v1188 = vpop.f32.mrf.mxu0
        %v1189 = vadd.f32 %v1099, %v1188
        %v1190 = vpop.f32.mrf.mxu0
        %v1191 = vadd.f32 %v1101, %v1190
        %1192 = vmatmul.bf16.gmra.mxu0 %v1167
        %v1193 = vpop.f32.mrf.mxu0
        %v1194 = vadd.f32 %v1104, %v1193
        %v1195 = vpop.f32.mrf.mxu0
        %v1196 = vadd.f32 %v1106, %v1195
        %1197 = vdwg.mxu0
        %1198 = vmatpush.bf16.msra.mxu0 0
        %1199 = vmatpush.bf16.msra.mxu0 0
        %1200 = vmatpush.bf16.msra.mxu0 0
        %1201 = vmatpush.bf16.msra.mxu0 0
        %1202 = vmatpush.bf16.msra.mxu0 0
        %1203 = vmatpush.bf16.msra.mxu0 0
        %1204 = vmatpush.bf16.msra.mxu0 0
        %1205 = vmatpush.bf16.msra.mxu0 %v1036
        %1206 = vmatmul.bf16.gmra.mxu0 %v1158
        %v1207 = vpop.f32.mrf.mxu0
        %v1208 = vadd.f32 %v1118, %v1207
        %v1209 = vpop.f32.mrf.mxu0
        %v1210 = vadd.f32 %v1120, %v1209
        %1211 = vmatmul.bf16.gmra.mxu0 %v1161
        %v1212 = vpop.f32.mrf.mxu0
        %v1213 = vadd.f32 %v1123, %v1212
        %v1214 = vpop.f32.mrf.mxu0
        %v1215 = vadd.f32 %v1125, %v1214
        %1216 = vmatmul.bf16.gmra.mxu0 %v1164
        %v1217 = vpop.f32.mrf.mxu0
        %v1218 = vadd.f32 %v1128, %v1217
        %v1219 = vpop.f32.mrf.mxu0
        %v1220 = vadd.f32 %v1130, %v1219
        %1221 = vmatmul.bf16.gmra.mxu0 %v1167
        %v1222 = vpop.f32.mrf.mxu0
        %v1223 = vadd.f32 %v1133, %v1222
        %v1224 = vpop.f32.mrf.mxu0
        %v1225 = vadd.f32 %v1135, %v1224
        %1226 = vdwg.mxu0
        %v1227 = vld [vmem:[%s8] sm:$0xff]
        %v1228 = vld [vmem:[%s8 + $0x8] sm:$0xff]
        %v1229 = vld [vmem:[%s8 + $0x10] sm:$0xff]
        %v1230 = vld [vmem:[%s8 + $0x18] sm:$0xff]
        %v1231 = vld [vmem:[%s8 + $0x20] sm:$0xff]
        %v1232 = vld [vmem:[%s8 + $0x28] sm:$0xff]
        %v1233 = vld [vmem:[%s8 + $0x30] sm:$0xff]
        %v1234 = vld [vmem:[%s8 + $0x38] sm:$0xff]
        %1236 = vset.pattern.permute.xlu0 0
        %1237 = vperm.xlu0 %1236, %v1227
        %v1238 = vpop.permute.xlu0 %1237
        %1241 = vset.pattern.permute.xlu0 0
        %1242 = vperm.xlu0 %1241, %v1228
        %v1243 = vpop.permute.xlu0 %1242
        %1246 = vset.pattern.permute.xlu0 0
        %1247 = vperm.xlu0 %1246, %v1229
        %v1248 = vpop.permute.xlu0 %1247
        %1251 = vset.pattern.permute.xlu0 0
        %1252 = vperm.xlu0 %1251, %v1230
        %v1253 = vpop.permute.xlu0 %1252
        %1256 = vset.pattern.permute.xlu0 0
        %1257 = vperm.xlu0 %1256, %v1231
        %v1258 = vpop.permute.xlu0 %1257
        %1261 = vset.pattern.permute.xlu0 0
        %1262 = vperm.xlu0 %1261, %v1232
        %v1263 = vpop.permute.xlu0 %1262
        %1266 = vset.pattern.permute.xlu0 0
        %1267 = vperm.xlu0 %1266, %v1233
        %v1268 = vpop.permute.xlu0 %1267
        %1271 = vset.pattern.permute.xlu0 0
        %1272 = vperm.xlu0 %1271, %v1234
        %v1273 = vpop.permute.xlu0 %1272
        %v1275 = vadd.f32 %v1179, %v1238
        %v1276 = vadd.f32 %v1208, %v1238
        %v1277 = vadd.f32 %v1181, %v1243
        %v1278 = vadd.f32 %v1210, %v1243
        %v1279 = vadd.f32 %v1184, %v1248
        %v1280 = vadd.f32 %v1213, %v1248
        %v1281 = vadd.f32 %v1186, %v1253
        %v1282 = vadd.f32 %v1215, %v1253
        %v1283 = vadd.f32 %v1189, %v1258
        %v1284 = vadd.f32 %v1218, %v1258
        %v1285 = vadd.f32 %v1191, %v1263
        %v1286 = vadd.f32 %v1220, %v1263
        %v1287 = vadd.f32 %v1194, %v1268
        %v1288 = vadd.f32 %v1223, %v1268
        %v1289 = vadd.f32 %v1196, %v1273
        %v1290 = vadd.f32 %v1225, %v1273
        %1292 = vset.pattern.permute.xlu0 0
        %1293 = vperm.xlu0 %1292, %v911
        %v1294 = vpop.permute.xlu0 %1293
        %1297 = vset.pattern.permute.xlu0 0
        %1298 = vperm.xlu0 %1297, %v912
        %v1299 = vpop.permute.xlu0 %1298
        %1302 = vset.pattern.permute.xlu0 0
        %1303 = vperm.xlu0 %1302, %v913
        %v1304 = vpop.permute.xlu0 %1303
        %1307 = vset.pattern.permute.xlu0 0
        %1308 = vperm.xlu0 %1307, %v914
        %v1309 = vpop.permute.xlu0 %1308
        %1312 = vset.pattern.permute.xlu0 0
        %1313 = vperm.xlu0 %1312, %v915
        %v1314 = vpop.permute.xlu0 %1313
        %1317 = vset.pattern.permute.xlu0 0
        %1318 = vperm.xlu0 %1317, %v916
        %v1319 = vpop.permute.xlu0 %1318
        %1322 = vset.pattern.permute.xlu0 0
        %1323 = vperm.xlu0 %1322, %v917
        %v1324 = vpop.permute.xlu0 %1323
        %1327 = vset.pattern.permute.xlu0 0
        %1328 = vperm.xlu0 %1327, %v918
        %v1329 = vpop.permute.xlu0 %1328
        %v1331 = vadd.f32 %v1275, %v1294
        %v1332 = vadd.f32 %v1276, %v1294
        %v1333 = vadd.f32 %v1277, %v1299
        %v1334 = vadd.f32 %v1278, %v1299
        %v1335 = vadd.f32 %v1279, %v1304
        %v1336 = vadd.f32 %v1280, %v1304
        %v1337 = vadd.f32 %v1281, %v1309
        %v1338 = vadd.f32 %v1282, %v1309
        %v1339 = vadd.f32 %v1283, %v1314
        %v1340 = vadd.f32 %v1284, %v1314
        %v1341 = vadd.f32 %v1285, %v1319
        %v1342 = vadd.f32 %v1286, %v1319
        %v1343 = vadd.f32 %v1287, %v1324
        %v1344 = vadd.f32 %v1288, %v1324
        %v1345 = vadd.f32 %v1289, %v1329
        %v1346 = vadd.f32 %v1290, %v1329
        %v1347 = vmul.f32 %v1331, 0.5
        %v1348 = vmul.f32 %v1332, 0.5
        %v1349 = vmul.f32 %v1333, 0.5
        %v1350 = vmul.f32 %v1334, 0.5
        %v1351 = vmul.f32 %v1335, 0.5
        %v1352 = vmul.f32 %v1336, 0.5
        %v1353 = vmul.f32 %v1337, 0.5
        %v1354 = vmul.f32 %v1338, 0.5
        %v1355 = vmul.f32 %v1339, 0.5
        %v1356 = vmul.f32 %v1340, 0.5
        %v1357 = vmul.f32 %v1341, 0.5
        %v1358 = vmul.f32 %v1342, 0.5
        %v1359 = vmul.f32 %v1343, 0.5
        %v1360 = vmul.f32 %v1344, 0.5
        %v1361 = vmul.f32 %v1345, 0.5
        %v1362 = vmul.f32 %v1346, 0.5
        %v1363 = vtanh.pop %v1347
        %v1364 = vtanh.pop %v1348
        %v1365 = vtanh.pop %v1349
        %v1366 = vtanh.pop %v1350
        %v1367 = vtanh.pop %v1351
        %v1368 = vtanh.pop %v1352
        %v1369 = vtanh.pop %v1353
        %v1370 = vtanh.pop %v1354
        %v1371 = vtanh.pop %v1355
        %v1372 = vtanh.pop %v1356
        %v1373 = vtanh.pop %v1357
        %v1374 = vtanh.pop %v1358
        %v1375 = vtanh.pop %v1359
        %v1376 = vtanh.pop %v1360
        %v1377 = vtanh.pop %v1361
        %v1378 = vtanh.pop %v1362
        %v1379 = vadd.f32 %v1363, 1.0
        %v1380 = vadd.f32 %v1364, 1.0
        %v1381 = vadd.f32 %v1365, 1.0
        %v1382 = vadd.f32 %v1366, 1.0
        %v1383 = vadd.f32 %v1367, 1.0
        %v1384 = vadd.f32 %v1368, 1.0
        %v1385 = vadd.f32 %v1369, 1.0
        %v1386 = vadd.f32 %v1370, 1.0
        %v1387 = vadd.f32 %v1371, 1.0
        %v1388 = vadd.f32 %v1372, 1.0
        %v1389 = vadd.f32 %v1373, 1.0
        %v1390 = vadd.f32 %v1374, 1.0
        %v1391 = vadd.f32 %v1375, 1.0
        %v1392 = vadd.f32 %v1376, 1.0
        %v1393 = vadd.f32 %v1377, 1.0
        %v1394 = vadd.f32 %v1378, 1.0
        %v1395 = vmul.f32 %v1379, 0.5
        %v1396 = vmul.f32 %v1380, 0.5
        %v1397 = vmul.f32 %v1381, 0.5
        %v1398 = vmul.f32 %v1382, 0.5
        %v1399 = vmul.f32 %v1383, 0.5
        %v1400 = vmul.f32 %v1384, 0.5
        %v1401 = vmul.f32 %v1385, 0.5
        %v1402 = vmul.f32 %v1386, 0.5
        %v1403 = vmul.f32 %v1387, 0.5
        %v1404 = vmul.f32 %v1388, 0.5
        %v1405 = vmul.f32 %v1389, 0.5
        %v1406 = vmul.f32 %v1390, 0.5
        %v1407 = vmul.f32 %v1391, 0.5
        %v1408 = vmul.f32 %v1392, 0.5
        %v1409 = vmul.f32 %v1393, 0.5
        %v1410 = vmul.f32 %v1394, 0.5
        %v1411 = vsub.f32 %v585, %v601
        %v1412 = vsub.f32 %v586, %v602
        %v1413 = vsub.f32 %v587, %v603
        %v1414 = vsub.f32 %v588, %v604
        %v1415 = vsub.f32 %v589, %v605
        %v1416 = vsub.f32 %v590, %v606
        %v1417 = vsub.f32 %v591, %v607
        %v1418 = vsub.f32 %v592, %v608
        %v1419 = vsub.f32 %v593, %v609
        %v1420 = vsub.f32 %v594, %v610
        %v1421 = vsub.f32 %v595, %v611
        %v1422 = vsub.f32 %v596, %v612
        %v1423 = vsub.f32 %v597, %v613
        %v1424 = vsub.f32 %v598, %v614
        %v1425 = vsub.f32 %v599, %v615
        %v1426 = vsub.f32 %v600, %v616
        %v1427 = vmul.f32 %v1411, %v1395
        %v1428 = vmul.f32 %v1412, %v1396
        %v1429 = vmul.f32 %v1413, %v1397
        %v1430 = vmul.f32 %v1414, %v1398
        %v1431 = vmul.f32 %v1415, %v1399
        %v1432 = vmul.f32 %v1416, %v1400
        %v1433 = vmul.f32 %v1417, %v1401
        %v1434 = vmul.f32 %v1418, %v1402
        %v1435 = vmul.f32 %v1419, %v1403
        %v1436 = vmul.f32 %v1420, %v1404
        %v1437 = vmul.f32 %v1421, %v1405
        %v1438 = vmul.f32 %v1422, %v1406
        %v1439 = vmul.f32 %v1423, %v1407
        %v1440 = vmul.f32 %v1424, %v1408
        %v1441 = vmul.f32 %v1425, %v1409
        %v1442 = vmul.f32 %v1426, %v1410
        %v1443 = vadd.f32 %v601, %v1427
        %v1444 = vadd.f32 %v602, %v1428
        %v1445 = vadd.f32 %v603, %v1429
        %v1446 = vadd.f32 %v604, %v1430
        %v1447 = vadd.f32 %v605, %v1431
        %v1448 = vadd.f32 %v606, %v1432
        %v1449 = vadd.f32 %v607, %v1433
        %v1450 = vadd.f32 %v608, %v1434
        %v1451 = vadd.f32 %v609, %v1435
        %v1452 = vadd.f32 %v610, %v1436
        %v1453 = vadd.f32 %v611, %v1437
        %v1454 = vadd.f32 %v612, %v1438
        %v1455 = vadd.f32 %v613, %v1439
        %v1456 = vadd.f32 %v614, %v1440
        %v1457 = vadd.f32 %v615, %v1441
        %v1458 = vadd.f32 %v616, %v1442
        %1459 = vst [vmem:[%s583] sm:$0xff] %v1443
        %1460 = vst [vmem:[%s583 + $0x8] sm:$0xff] %v1444
        %1461 = vst [vmem:[%s583 + $0x10] sm:$0xff] %v1445
        %1462 = vst [vmem:[%s583 + $0x18] sm:$0xff] %v1446
        %1463 = vst [vmem:[%s583 + $0x20] sm:$0xff] %v1447
        %1464 = vst [vmem:[%s583 + $0x28] sm:$0xff] %v1448
        %1465 = vst [vmem:[%s583 + $0x30] sm:$0xff] %v1449
        %1466 = vst [vmem:[%s583 + $0x38] sm:$0xff] %v1450
        %1467 = vst [vmem:[%s583 + $0x40] sm:$0xff] %v1451
        %1468 = vst [vmem:[%s583 + $0x48] sm:$0xff] %v1452
        %1469 = vst [vmem:[%s583 + $0x50] sm:$0xff] %v1453
        %1470 = vst [vmem:[%s583 + $0x58] sm:$0xff] %v1454
        %1471 = vst [vmem:[%s583 + $0x60] sm:$0xff] %v1455
        %1472 = vst [vmem:[%s583 + $0x68] sm:$0xff] %v1456
        %1473 = vst [vmem:[%s583 + $0x70] sm:$0xff] %v1457
        %1474 = vst [vmem:[%s583 + $0x78] sm:$0xff] %v1458
        %s1475 = sand.u32 %s390, 1
        %s1476 = scalar_lea.sflag [#allocation4], %s1475
        %s1477 = sand.u32 %s390, 1
        %s1478 = smul.addr %s1477, 128
        %s1479 = scalar_lea.vmem [#allocation7], %s1478
        // Predicated region
        $region93: #{tpu_custom_call.1} parent=83 // pred_check
          %p1480 = pneg %p400
        $region94: #{tpu_custom_call.1} parent=83 // pred_check_branch
          %1482 = sbr.rel (%p1480) target = $region96
        $region95: #{tpu_custom_call.1} parent=83 // pred_region
          %1484 = vsyncadd %s1476, 0
          %s1485 = smul.addr %s36, 16
          %s1486 = smul.addr %s1485, 8
          %s1487 = scalar_lea.hbm %s16, %s1486
          %s1488 = sshll.u32 %s1479, 4
          %s1489 = int_to_ptr.vmem [resolvable:$true] %s1488
          %s1490 = sshll.u32 %s1487, 4
          %s1491 = int_to_ptr.hbm [resolvable:$true] %s1490
          %1496 = dma.vmem_to_hbm [thread:$0]  %s1489, 2048, %s1491, %s1476, 256, 256, 16
        $region96: #{tpu_custom_call.1} parent=83 // pred_fallthru
          _
      $region84: #{tpu_custom_call.1} parent=5 // pred_fallthru
        _
      %p1497 = scmp.le.s32.totalorder 2, %s31
      // Predicated region
      $region97: #{tpu_custom_call.1} parent=5 // pred_check
        %p1498 = pneg %p1497
      $region98: #{tpu_custom_call.1} parent=5 // pred_check_branch
        %1500 = sbr.rel (%p1498) target = $region100
      $region99: #{tpu_custom_call.1} parent=5 // pred_region
        %s1501 = ssub.s32 %s31, 2
        // Predicated region
        $region101: #{tpu_custom_call.1} parent=99 // pred_check
          %p1502 = pneg %p406
        $region102: #{tpu_custom_call.1} parent=99 // pred_check_branch
          %1504 = sbr.rel (%p1502) target = $region104
        $region103: #{tpu_custom_call.1} parent=99 // pred_region
          %s1505 = sand.u32 %s391, 1
          %s1506 = scalar_lea.sflag [#allocation4], %s1505
          %s1507 = sand.u32 %s391, 1
          %s1508 = smul.addr %s1507, 128
          %s1509 = scalar_lea.vmem [#allocation7], %s1508
          %1511 = dma.done %s1506, 2048
        $region104: #{tpu_custom_call.1} parent=99 // pred_fallthru
          _
      $region100: #{tpu_custom_call.1} parent=5 // pred_fallthru
        _
    $region6: #{tpu_custom_call.1} parent=1 // loop_footer
      %s35 = sadd.s32 1, %s31
    $region7: #{tpu_custom_call.1} parent=1 // loop_footer_branch
      %30 = sbr.rel target = $region3
    $region8: #{tpu_custom_call.1} parent=1 // loop_exit
      _
    %1512 = vsyncpa [#allocation3], 1
    %s1513 = scalar_lea.sflag [#allocation3], 1
    %1514 = vsyncpa %s1513, 1
    %1515 = vsyncpa [#allocation6], 1
    %s1516 = scalar_lea.sflag [#allocation6], 1
    %1517 = vsyncpa %s1516, 1
    %1518 = vsyncpa [#allocation4], 1
    %s1519 = scalar_lea.sflag [#allocation4], 1
    %1520 = vsyncpa %s1519, 1

</llo_original>
